<compile_context>
chip_gen: v5e
topology: v5e:2x2
jax: 0.10.0
libtpu: 0.0.40
codegen_flags: <defaults>
</compile_context>

<pallas_src>
import jax
import jax.numpy as jnp
from jax import lax
from jax.experimental import pallas as pl
from jax.experimental.pallas import tpu as pltpu


# ----------------------------------------------------------------------------
# Fused encoder + decoder kernel (one batch tile per grid step).
#   x_ref       : [Bt, T, I]   raw input, batch-first
#   wih_e_ref   : [I, 4H]      encoder input weight (transposed, gates i,f,o,g)
#   b_e_ref     : [1, 4H]      encoder fused bias (i,f,o,g)
#   whh_e_ref   : [H, 4H]      encoder recurrent weight (transposed, i,f,o,g)
#   wih_d_ref   : [H, 4I]      decoder input weight (transposed, i,f,o,g)
#   whh_d_ref   : [I, 4I]      decoder recurrent weight (transposed, i,f,o,g)
#   b_d_ref     : [1, 4I]      decoder fused bias (i,f,o,g)
#   out_ref     : [Bt, T*I]    decoder hidden states, lane-dense slab
# ----------------------------------------------------------------------------
def fused_lstm_ae_kernel(x_ref, wih_e_ref, b_e_ref, whh_e_ref,
                         wih_d_ref, whh_d_ref, b_d_ref, out_ref):
    Bt, T, I = x_ref.shape
    H = whh_e_ref.shape[0]

    # ---- hoisted encoder input projection (one MXU matmul, in-kernel) ------
    x = x_ref[...].astype(jnp.float32)                          # [Bt, T, I]
    xw = jnp.dot(x.reshape(Bt * T, I), wih_e_ref[...],
                 preferred_element_type=jnp.float32) + b_e_ref[...]
    xw = xw.reshape(Bt, T, 4 * H)                               # [Bt, T, 4H]

    whh_e = whh_e_ref[...]

    # ---- encoder recurrence (fully unrolled; only the final h survives) ----
    h = jnp.zeros((Bt, H), jnp.float32)
    c = jnp.zeros((Bt, H), jnp.float32)
    for t in range(T):                                          # static unroll
        gates = xw[:, t, :] + jnp.dot(h, whh_e,
                                      preferred_element_type=jnp.float32)
        # gate columns are (i, f, o, g): sigmoid on contiguous 3H, tanh on H
        sig = jax.nn.sigmoid(gates[:, :3 * H])
        g_g = jnp.tanh(gates[:, 3 * H:])
        i_g = sig[:, 0 * H:1 * H]
        f_g = sig[:, 1 * H:2 * H]
        o_g = sig[:, 2 * H:3 * H]
        c = f_g * c + i_g * g_g
        h = o_g * jnp.tanh(c)

    # ---- decoder: constant input == encoder final hidden; project once -----
    xw_d = jnp.dot(h, wih_d_ref[...],
                   preferred_element_type=jnp.float32) + b_d_ref[...]   # [Bt, 4I]
    whh_d = whh_d_ref[...]                                              # [I, 4I]

    hd = jnp.zeros((Bt, I), jnp.float32)
    cd = jnp.zeros((Bt, I), jnp.float32)
    outs = []
    for t in range(T):                                          # static unroll
        if I <= 16:
            # tiny [Bt,I]x[I,4I]: VPU broadcast-FMA, keeps MXU out of the
            # serial decoder chain.
            gates = xw_d
            for k in range(I):
                gates = gates + hd[:, k:k + 1] * whh_d[k:k + 1, :]
        else:
            gates = xw_d + jnp.dot(hd, whh_d,
                                   preferred_element_type=jnp.float32)
        sig = jax.nn.sigmoid(gates[:, :3 * I])
        g_g = jnp.tanh(gates[:, 3 * I:])
        i_g = sig[:, 0 * I:1 * I]
        f_g = sig[:, 1 * I:2 * I]
        o_g = sig[:, 2 * I:3 * I]
        cd = f_g * cd + i_g * g_g
        hd = o_g * jnp.tanh(cd)
        outs.append(hd)

    # one lane-dense store instead of T masked narrow stores
    out_ref[...] = jnp.concatenate(outs, axis=-1).astype(out_ref.dtype)


# ----------------------------------------------------------------------------
# One-time weight preparation (outside the jitted forward).
# PyTorch gate order (i, f, g, o) is permuted to (i, f, o, g) so the kernel
# applies sigmoid to one contiguous block and tanh to the last block.
# ----------------------------------------------------------------------------
def _permute_gate_cols(w, h):
    return jnp.concatenate(
        [w[..., 0 * h:1 * h], w[..., 1 * h:2 * h],
         w[..., 3 * h:4 * h], w[..., 2 * h:3 * h]], axis=-1)


def prepare_params(params):
    H = params["enc_w_hh"].shape[1]
    I = params["dec_w_hh"].shape[1]
    f32 = jnp.float32
    return {
        "enc_wih_t": _permute_gate_cols(params["enc_w_ih"].T.astype(f32), H),  # [I, 4H]
        "enc_whh_t": _permute_gate_cols(params["enc_w_hh"].T.astype(f32), H),  # [H, 4H]
        "enc_b": _permute_gate_cols(
            (params["enc_b_ih"] + params["enc_b_hh"]).reshape(1, -1).astype(f32), H),
        "dec_wih_t": _permute_gate_cols(params["dec_w_ih"].T.astype(f32), I),  # [H, 4I]
        "dec_whh_t": _permute_gate_cols(params["dec_w_hh"].T.astype(f32), I),  # [I, 4I]
        "dec_b": _permute_gate_cols(
            (params["dec_b_ih"] + params["dec_b_hh"]).reshape(1, -1).astype(f32), I),
    }


# ----------------------------------------------------------------------------
# LSTMAutoencoder forward (matches the PyTorch module semantics)
# ----------------------------------------------------------------------------
@jax.jit
def lstm_autoencoder_forward(x, prep):
    # x: [B, T, input_dim]  (batch_first=True)
    B, T, I = x.shape
    H = prep["enc_whh_t"].shape[0]
    x = x.astype(jnp.float32)

    # Batch tiling: one block normally; split in half (parallel grid axis) when
    # B is big enough that each tile keeps >= 8 sublanes -- lets v7x use both
    # TensorCores on independent sequences.
    bt = B // 2 if (B % 16 == 0) else B
    grid = (B // bt,)

    out_flat = pl.pallas_call(
        fused_lstm_ae_kernel,
        out_shape=jax.ShapeDtypeStruct((B, T * I), jnp.float32),
        grid=grid,
        in_specs=[
            pl.BlockSpec((bt, T, I), lambda b: (b, 0, 0)),
            pl.BlockSpec((I, 4 * H), lambda b: (0, 0)),
            pl.BlockSpec((1, 4 * H), lambda b: (0, 0)),
            pl.BlockSpec((H, 4 * H), lambda b: (0, 0)),
            pl.BlockSpec((H, 4 * I), lambda b: (0, 0)),
            pl.BlockSpec((I, 4 * I), lambda b: (0, 0)),
            pl.BlockSpec((1, 4 * I), lambda b: (0, 0)),
        ],
        out_specs=pl.BlockSpec((bt, T * I), lambda b: (b, 0)),
        compiler_params=pltpu.CompilerParams(
            dimension_semantics=("parallel",),
            vmem_limit_bytes=32 * 1024 * 1024),
    )(x, prep["enc_wih_t"], prep["enc_b"], prep["enc_whh_t"],
      prep["dec_wih_t"], prep["dec_whh_t"], prep["dec_b"])

    # free row-major reshape: [B, T*I] -> [B, T, I]  (no transpose needed)
    return out_flat.reshape(B, T, I)


# ----------------------------------------------------------------------------
# Pure-JAX reference (correctness sanity check, PyTorch gate order i,f,g,o)
# ----------------------------------------------------------------------------
def lstm_ref(x_tm, w_ih, w_hh, b_ih, b_hh):
    T, B, _ = x_tm.shape
    H = w_ih.shape[0] // 4
    wih_t, whh_t = w_ih.T, w_hh.T
    b = (b_ih + b_hh)[None, :]

    def step(carry, xt):
        h, c = carry
        g = (jnp.dot(xt, wih_t, precision=lax.Precision.HIGHEST)
             + jnp.dot(h, whh_t, precision=lax.Precision.HIGHEST) + b)
        i_g = jax.nn.sigmoid(g[:, 0 * H:1 * H])
        f_g = jax.nn.sigmoid(g[:, 1 * H:2 * H])
        g_g = jnp.tanh(g[:, 2 * H:3 * H])
        o_g = jax.nn.sigmoid(g[:, 3 * H:4 * H])
        c_n = f_g * c + i_g * g_g
        h_n = o_g * jnp.tanh(c_n)
        return (h_n, c_n), h_n

    init = (jnp.zeros((B, H), jnp.float32), jnp.zeros((B, H), jnp.float32))
    _, hs = jax.lax.scan(step, init, x_tm)
    return hs                                                    # [T, B, H]


def forward_ref(x, params):
    B, T, _ = x.shape
    x_tm = jnp.transpose(x, (1, 0, 2)).astype(jnp.float32)
    enc = lstm_ref(x_tm, params["enc_w_ih"], params["enc_w_hh"],
                   params["enc_b_ih"], params["enc_b_hh"])
    hidden = enc[-1]
    dec_in = jnp.broadcast_to(hidden[None], (T, B, hidden.shape[-1]))
    dec = lstm_ref(dec_in, params["dec_w_ih"], params["dec_w_hh"],
                   params["dec_b_ih"], params["dec_b_hh"])
    return jnp.transpose(dec, (1, 0, 2))


def init_params(key, input_dim, hidden_dim):
    """Deterministic PyTorch-style LSTM init: U(-1/sqrt(H), 1/sqrt(H))."""
    keys = jax.random.split(key, 8)

    def u(k, shape, hsize):
        bound = 1.0 / jnp.sqrt(jnp.float32(hsize))
        return jax.random.uniform(k, shape, jnp.float32, -bound, bound)

    return {
        # encoder: LSTM(input_dim -> hidden_dim)
        "enc_w_ih": u(keys[0], (4 * hidden_dim, input_dim), hidden_dim),
        "enc_w_hh": u(keys[1], (4 * hidden_dim, hidden_dim), hidden_dim),
        "enc_b_ih": u(keys[2], (4 * hidden_dim,), hidden_dim),
        "enc_b_hh": u(keys[3], (4 * hidden_dim,), hidden_dim),
        # decoder: LSTM(hidden_dim -> input_dim)
        "dec_w_ih": u(keys[4], (4 * input_dim, hidden_dim), input_dim),
        "dec_w_hh": u(keys[5], (4 * input_dim, input_dim), input_dim),
        "dec_b_ih": u(keys[6], (4 * input_dim,), input_dim),
        "dec_b_hh": u(keys[7], (4 * input_dim,), input_dim),
    }


if __name__ == "__main__":
    B, T, INPUT_DIM, HIDDEN_DIM = 2, 8, 4, 32

    key = jax.random.PRNGKey(0)
    kx, kp = jax.random.split(key)
    x = jax.random.normal(kx, (B, T, INPUT_DIM), jnp.float32)
    params = init_params(kp, INPUT_DIM, HIDDEN_DIM)
    prep = prepare_params(params)

    out = jax.block_until_ready(lstm_autoencoder_forward(x, prep))
    ref = jax.block_until_ready(forward_ref(x, params))

    assert out.shape == (B, T, INPUT_DIM), out.shape
    assert jnp.allclose(out, ref, rtol=1e-4, atol=1e-5), \
        float(jnp.max(jnp.abs(out - ref)))

    print("KERNEL_OK")
</pallas_src>

<mosaic_0001>
module attributes {stable_mosaic.version = 11 : i64} {
  func.func @fused_lstm_ae_kernel(%arg0: i32, %arg1: memref<2x8x4xf32, #tpu.memory_space<vmem>>, %arg2: memref<4x128xf32, #tpu.memory_space<vmem>>, %arg3: memref<1x128xf32, #tpu.memory_space<vmem>>, %arg4: memref<32x128xf32, #tpu.memory_space<vmem>>, %arg5: memref<32x16xf32, #tpu.memory_space<vmem>>, %arg6: memref<4x16xf32, #tpu.memory_space<vmem>>, %arg7: memref<1x16xf32, #tpu.memory_space<vmem>>, %arg8: memref<2x32xf32, #tpu.memory_space<vmem>>) attributes {dimension_semantics = [#tpu.dimension_semantics<parallel>], iteration_bounds = array<i64: 1>, scalar_prefetch = 0 : i64, scratch_operands = 0 : i64, tpu.core_type = #tpu.core_type<tc>, window_params = [{transform_indices = @transform_0, window_bounds = array<i64: 2, 8, 4>}, {pipeline_mode = #tpu.pipeline_mode<synchronous>, transform_indices = @transform_1, window_bounds = array<i64: 4, 128>}, {pipeline_mode = #tpu.pipeline_mode<synchronous>, transform_indices = @transform_2, window_bounds = array<i64: 1, 128>}, {pipeline_mode = #tpu.pipeline_mode<synchronous>, transform_indices = @transform_3, window_bounds = array<i64: 32, 128>}, {pipeline_mode = #tpu.pipeline_mode<synchronous>, transform_indices = @transform_4, window_bounds = array<i64: 32, 16>}, {pipeline_mode = #tpu.pipeline_mode<synchronous>, transform_indices = @transform_5, window_bounds = array<i64: 4, 16>}, {pipeline_mode = #tpu.pipeline_mode<synchronous>, transform_indices = @transform_6, window_bounds = array<i64: 1, 16>}, {transform_indices = @transform_7, window_bounds = array<i64: 2, 32>}]} {
    %c0 = arith.constant 0 : index
    %c0_0 = arith.constant 0 : index
    %c0_1 = arith.constant 0 : index
    %0 = vector.load %arg1[%c0, %c0_0, %c0_1] : memref<2x8x4xf32, #tpu.memory_space<vmem>>, vector<2x8x4xf32>
    %1 = vector.shape_cast %0 : vector<2x8x4xf32> to vector<16x4xf32>
    %c0_2 = arith.constant 0 : index
    %c0_3 = arith.constant 0 : index
    %2 = vector.load %arg2[%c0_2, %c0_3] : memref<4x128xf32, #tpu.memory_space<vmem>>, vector<4x128xf32>
    %cst = arith.constant dense<0.000000e+00> : vector<16x128xf32>
    %3 = tpu.matmul %1, %2, %cst {dimension_numbers = #tpu.dot_dimension_numbers<[1], [0], [0], [1], [0, 0, 1, 1], [], []>} : vector<16x4xf32>, vector<4x128xf32>, vector<16x128xf32> -> vector<16x128xf32>
    %c0_4 = arith.constant 0 : index
    %c0_5 = arith.constant 0 : index
    %4 = vector.load %arg3[%c0_4, %c0_5] : memref<1x128xf32, #tpu.memory_space<vmem>>, vector<1x128xf32>
    %5 = vector.broadcast %4 : vector<1x128xf32> to vector<16x128xf32>
    %6 = arith.addf %3, %5 : vector<16x128xf32>
    %7 = vector.shape_cast %6 : vector<16x128xf32> to vector<2x8x128xf32>
    %c0_6 = arith.constant 0 : index
    %c0_7 = arith.constant 0 : index
    %8 = vector.load %arg4[%c0_6, %c0_7] : memref<32x128xf32, #tpu.memory_space<vmem>>, vector<32x128xf32>
    %cst_8 = arith.constant 0.000000e+00 : f32
    %9 = vector.broadcast %cst_8 : f32 to vector<2x32xf32>
    %cst_9 = arith.constant 0.000000e+00 : f32
    %10 = vector.broadcast %cst_9 : f32 to vector<2x32xf32>
    %11 = vector.extract_strided_slice %7 {offsets = [0, 0, 0], sizes = [2, 1, 128], strides = [1, 1, 1]} : vector<2x8x128xf32> to vector<2x1x128xf32>
    %12 = vector.shape_cast %11 : vector<2x1x128xf32> to vector<2x128xf32>
    %cst_10 = arith.constant dense<0.000000e+00> : vector<2x128xf32>
    %13 = tpu.matmul %9, %8, %cst_10 {dimension_numbers = #tpu.dot_dimension_numbers<[1], [0], [0], [1], [0, 0, 1, 1], [], []>} : vector<2x32xf32>, vector<32x128xf32>, vector<2x128xf32> -> vector<2x128xf32>
    %14 = arith.addf %12, %13 : vector<2x128xf32>
    %15 = vector.extract_strided_slice %14 {offsets = [0, 0], sizes = [2, 96], strides = [1, 1]} : vector<2x128xf32> to vector<2x96xf32>
    %16 = arith.negf %15 : vector<2x96xf32>
    %17 = math.exp %16 : vector<2x96xf32>
    %cst_11 = arith.constant 1.000000e+00 : f32
    %18 = vector.broadcast %cst_11 : f32 to vector<2x96xf32>
    %19 = arith.addf %18, %17 : vector<2x96xf32>
    %20 = arith.divf %18, %19 : vector<2x96xf32>
    %21 = vector.extract_strided_slice %14 {offsets = [0, 96], sizes = [2, 32], strides = [1, 1]} : vector<2x128xf32> to vector<2x32xf32>
    %22 = math.tanh %21 : vector<2x32xf32>
    %23 = vector.extract_strided_slice %20 {offsets = [0, 0], sizes = [2, 32], strides = [1, 1]} : vector<2x96xf32> to vector<2x32xf32>
    %24 = vector.extract_strided_slice %20 {offsets = [0, 32], sizes = [2, 32], strides = [1, 1]} : vector<2x96xf32> to vector<2x32xf32>
    %25 = vector.extract_strided_slice %20 {offsets = [0, 64], sizes = [2, 32], strides = [1, 1]} : vector<2x96xf32> to vector<2x32xf32>
    %26 = arith.mulf %24, %10 : vector<2x32xf32>
    %27 = arith.mulf %23, %22 : vector<2x32xf32>
    %28 = arith.addf %26, %27 : vector<2x32xf32>
    %29 = math.tanh %28 : vector<2x32xf32>
    %30 = arith.mulf %25, %29 : vector<2x32xf32>
    %31 = vector.extract_strided_slice %7 {offsets = [0, 1, 0], sizes = [2, 1, 128], strides = [1, 1, 1]} : vector<2x8x128xf32> to vector<2x1x128xf32>
    %32 = vector.shape_cast %31 : vector<2x1x128xf32> to vector<2x128xf32>
    %cst_12 = arith.constant dense<0.000000e+00> : vector<2x128xf32>
    %33 = tpu.matmul %30, %8, %cst_12 {dimension_numbers = #tpu.dot_dimension_numbers<[1], [0], [0], [1], [0, 0, 1, 1], [], []>} : vector<2x32xf32>, vector<32x128xf32>, vector<2x128xf32> -> vector<2x128xf32>
    %34 = arith.addf %32, %33 : vector<2x128xf32>
    %35 = vector.extract_strided_slice %34 {offsets = [0, 0], sizes = [2, 96], strides = [1, 1]} : vector<2x128xf32> to vector<2x96xf32>
    %36 = arith.negf %35 : vector<2x96xf32>
    %37 = math.exp %36 : vector<2x96xf32>
    %cst_13 = arith.constant 1.000000e+00 : f32
    %38 = vector.broadcast %cst_13 : f32 to vector<2x96xf32>
    %39 = arith.addf %38, %37 : vector<2x96xf32>
    %40 = arith.divf %38, %39 : vector<2x96xf32>
    %41 = vector.extract_strided_slice %34 {offsets = [0, 96], sizes = [2, 32], strides = [1, 1]} : vector<2x128xf32> to vector<2x32xf32>
    %42 = math.tanh %41 : vector<2x32xf32>
    %43 = vector.extract_strided_slice %40 {offsets = [0, 0], sizes = [2, 32], strides = [1, 1]} : vector<2x96xf32> to vector<2x32xf32>
    %44 = vector.extract_strided_slice %40 {offsets = [0, 32], sizes = [2, 32], strides = [1, 1]} : vector<2x96xf32> to vector<2x32xf32>
    %45 = vector.extract_strided_slice %40 {offsets = [0, 64], sizes = [2, 32], strides = [1, 1]} : vector<2x96xf32> to vector<2x32xf32>
    %46 = arith.mulf %44, %28 : vector<2x32xf32>
    %47 = arith.mulf %43, %42 : vector<2x32xf32>
    %48 = arith.addf %46, %47 : vector<2x32xf32>
    %49 = math.tanh %48 : vector<2x32xf32>
    %50 = arith.mulf %45, %49 : vector<2x32xf32>
    %51 = vector.extract_strided_slice %7 {offsets = [0, 2, 0], sizes = [2, 1, 128], strides = [1, 1, 1]} : vector<2x8x128xf32> to vector<2x1x128xf32>
    %52 = vector.shape_cast %51 : vector<2x1x128xf32> to vector<2x128xf32>
    %cst_14 = arith.constant dense<0.000000e+00> : vector<2x128xf32>
    %53 = tpu.matmul %50, %8, %cst_14 {dimension_numbers = #tpu.dot_dimension_numbers<[1], [0], [0], [1], [0, 0, 1, 1], [], []>} : vector<2x32xf32>, vector<32x128xf32>, vector<2x128xf32> -> vector<2x128xf32>
    %54 = arith.addf %52, %53 : vector<2x128xf32>
    %55 = vector.extract_strided_slice %54 {offsets = [0, 0], sizes = [2, 96], strides = [1, 1]} : vector<2x128xf32> to vector<2x96xf32>
    %56 = arith.negf %55 : vector<2x96xf32>
    %57 = math.exp %56 : vector<2x96xf32>
    %cst_15 = arith.constant 1.000000e+00 : f32
    %58 = vector.broadcast %cst_15 : f32 to vector<2x96xf32>
    %59 = arith.addf %58, %57 : vector<2x96xf32>
    %60 = arith.divf %58, %59 : vector<2x96xf32>
    %61 = vector.extract_strided_slice %54 {offsets = [0, 96], sizes = [2, 32], strides = [1, 1]} : vector<2x128xf32> to vector<2x32xf32>
    %62 = math.tanh %61 : vector<2x32xf32>
    %63 = vector.extract_strided_slice %60 {offsets = [0, 0], sizes = [2, 32], strides = [1, 1]} : vector<2x96xf32> to vector<2x32xf32>
    %64 = vector.extract_strided_slice %60 {offsets = [0, 32], sizes = [2, 32], strides = [1, 1]} : vector<2x96xf32> to vector<2x32xf32>
    %65 = vector.extract_strided_slice %60 {offsets = [0, 64], sizes = [2, 32], strides = [1, 1]} : vector<2x96xf32> to vector<2x32xf32>
    %66 = arith.mulf %64, %48 : vector<2x32xf32>
    %67 = arith.mulf %63, %62 : vector<2x32xf32>
    %68 = arith.addf %66, %67 : vector<2x32xf32>
    %69 = math.tanh %68 : vector<2x32xf32>
    %70 = arith.mulf %65, %69 : vector<2x32xf32>
    %71 = vector.extract_strided_slice %7 {offsets = [0, 3, 0], sizes = [2, 1, 128], strides = [1, 1, 1]} : vector<2x8x128xf32> to vector<2x1x128xf32>
    %72 = vector.shape_cast %71 : vector<2x1x128xf32> to vector<2x128xf32>
    %cst_16 = arith.constant dense<0.000000e+00> : vector<2x128xf32>
    %73 = tpu.matmul %70, %8, %cst_16 {dimension_numbers = #tpu.dot_dimension_numbers<[1], [0], [0], [1], [0, 0, 1, 1], [], []>} : vector<2x32xf32>, vector<32x128xf32>, vector<2x128xf32> -> vector<2x128xf32>
    %74 = arith.addf %72, %73 : vector<2x128xf32>
    %75 = vector.extract_strided_slice %74 {offsets = [0, 0], sizes = [2, 96], strides = [1, 1]} : vector<2x128xf32> to vector<2x96xf32>
    %76 = arith.negf %75 : vector<2x96xf32>
    %77 = math.exp %76 : vector<2x96xf32>
    %cst_17 = arith.constant 1.000000e+00 : f32
    %78 = vector.broadcast %cst_17 : f32 to vector<2x96xf32>
    %79 = arith.addf %78, %77 : vector<2x96xf32>
    %80 = arith.divf %78, %79 : vector<2x96xf32>
    %81 = vector.extract_strided_slice %74 {offsets = [0, 96], sizes = [2, 32], strides = [1, 1]} : vector<2x128xf32> to vector<2x32xf32>
    %82 = math.tanh %81 : vector<2x32xf32>
    %83 = vector.extract_strided_slice %80 {offsets = [0, 0], sizes = [2, 32], strides = [1, 1]} : vector<2x96xf32> to vector<2x32xf32>
    %84 = vector.extract_strided_slice %80 {offsets = [0, 32], sizes = [2, 32], strides = [1, 1]} : vector<2x96xf32> to vector<2x32xf32>
    %85 = vector.extract_strided_slice %80 {offsets = [0, 64], sizes = [2, 32], strides = [1, 1]} : vector<2x96xf32> to vector<2x32xf32>
    %86 = arith.mulf %84, %68 : vector<2x32xf32>
    %87 = arith.mulf %83, %82 : vector<2x32xf32>
    %88 = arith.addf %86, %87 : vector<2x32xf32>
    %89 = math.tanh %88 : vector<2x32xf32>
    %90 = arith.mulf %85, %89 : vector<2x32xf32>
    %91 = vector.extract_strided_slice %7 {offsets = [0, 4, 0], sizes = [2, 1, 128], strides = [1, 1, 1]} : vector<2x8x128xf32> to vector<2x1x128xf32>
    %92 = vector.shape_cast %91 : vector<2x1x128xf32> to vector<2x128xf32>
    %cst_18 = arith.constant dense<0.000000e+00> : vector<2x128xf32>
    %93 = tpu.matmul %90, %8, %cst_18 {dimension_numbers = #tpu.dot_dimension_numbers<[1], [0], [0], [1], [0, 0, 1, 1], [], []>} : vector<2x32xf32>, vector<32x128xf32>, vector<2x128xf32> -> vector<2x128xf32>
    %94 = arith.addf %92, %93 : vector<2x128xf32>
    %95 = vector.extract_strided_slice %94 {offsets = [0, 0], sizes = [2, 96], strides = [1, 1]} : vector<2x128xf32> to vector<2x96xf32>
    %96 = arith.negf %95 : vector<2x96xf32>
    %97 = math.exp %96 : vector<2x96xf32>
    %cst_19 = arith.constant 1.000000e+00 : f32
    %98 = vector.broadcast %cst_19 : f32 to vector<2x96xf32>
    %99 = arith.addf %98, %97 : vector<2x96xf32>
    %100 = arith.divf %98, %99 : vector<2x96xf32>
    %101 = vector.extract_strided_slice %94 {offsets = [0, 96], sizes = [2, 32], strides = [1, 1]} : vector<2x128xf32> to vector<2x32xf32>
    %102 = math.tanh %101 : vector<2x32xf32>
    %103 = vector.extract_strided_slice %100 {offsets = [0, 0], sizes = [2, 32], strides = [1, 1]} : vector<2x96xf32> to vector<2x32xf32>
    %104 = vector.extract_strided_slice %100 {offsets = [0, 32], sizes = [2, 32], strides = [1, 1]} : vector<2x96xf32> to vector<2x32xf32>
    %105 = vector.extract_strided_slice %100 {offsets = [0, 64], sizes = [2, 32], strides = [1, 1]} : vector<2x96xf32> to vector<2x32xf32>
    %106 = arith.mulf %104, %88 : vector<2x32xf32>
    %107 = arith.mulf %103, %102 : vector<2x32xf32>
    %108 = arith.addf %106, %107 : vector<2x32xf32>
    %109 = math.tanh %108 : vector<2x32xf32>
    %110 = arith.mulf %105, %109 : vector<2x32xf32>
    %111 = vector.extract_strided_slice %7 {offsets = [0, 5, 0], sizes = [2, 1, 128], strides = [1, 1, 1]} : vector<2x8x128xf32> to vector<2x1x128xf32>
    %112 = vector.shape_cast %111 : vector<2x1x128xf32> to vector<2x128xf32>
    %cst_20 = arith.constant dense<0.000000e+00> : vector<2x128xf32>
    %113 = tpu.matmul %110, %8, %cst_20 {dimension_numbers = #tpu.dot_dimension_numbers<[1], [0], [0], [1], [0, 0, 1, 1], [], []>} : vector<2x32xf32>, vector<32x128xf32>, vector<2x128xf32> -> vector<2x128xf32>
    %114 = arith.addf %112, %113 : vector<2x128xf32>
    %115 = vector.extract_strided_slice %114 {offsets = [0, 0], sizes = [2, 96], strides = [1, 1]} : vector<2x128xf32> to vector<2x96xf32>
    %116 = arith.negf %115 : vector<2x96xf32>
    %117 = math.exp %116 : vector<2x96xf32>
    %cst_21 = arith.constant 1.000000e+00 : f32
    %118 = vector.broadcast %cst_21 : f32 to vector<2x96xf32>
    %119 = arith.addf %118, %117 : vector<2x96xf32>
    %120 = arith.divf %118, %119 : vector<2x96xf32>
    %121 = vector.extract_strided_slice %114 {offsets = [0, 96], sizes = [2, 32], strides = [1, 1]} : vector<2x128xf32> to vector<2x32xf32>
    %122 = math.tanh %121 : vector<2x32xf32>
    %123 = vector.extract_strided_slice %120 {offsets = [0, 0], sizes = [2, 32], strides = [1, 1]} : vector<2x96xf32> to vector<2x32xf32>
    %124 = vector.extract_strided_slice %120 {offsets = [0, 32], sizes = [2, 32], strides = [1, 1]} : vector<2x96xf32> to vector<2x32xf32>
    %125 = vector.extract_strided_slice %120 {offsets = [0, 64], sizes = [2, 32], strides = [1, 1]} : vector<2x96xf32> to vector<2x32xf32>
    %126 = arith.mulf %124, %108 : vector<2x32xf32>
    %127 = arith.mulf %123, %122 : vector<2x32xf32>
    %128 = arith.addf %126, %127 : vector<2x32xf32>
    %129 = math.tanh %128 : vector<2x32xf32>
    %130 = arith.mulf %125, %129 : vector<2x32xf32>
    %131 = vector.extract_strided_slice %7 {offsets = [0, 6, 0], sizes = [2, 1, 128], strides = [1, 1, 1]} : vector<2x8x128xf32> to vector<2x1x128xf32>
    %132 = vector.shape_cast %131 : vector<2x1x128xf32> to vector<2x128xf32>
    %cst_22 = arith.constant dense<0.000000e+00> : vector<2x128xf32>
    %133 = tpu.matmul %130, %8, %cst_22 {dimension_numbers = #tpu.dot_dimension_numbers<[1], [0], [0], [1], [0, 0, 1, 1], [], []>} : vector<2x32xf32>, vector<32x128xf32>, vector<2x128xf32> -> vector<2x128xf32>
    %134 = arith.addf %132, %133 : vector<2x128xf32>
    %135 = vector.extract_strided_slice %134 {offsets = [0, 0], sizes = [2, 96], strides = [1, 1]} : vector<2x128xf32> to vector<2x96xf32>
    %136 = arith.negf %135 : vector<2x96xf32>
    %137 = math.exp %136 : vector<2x96xf32>
    %cst_23 = arith.constant 1.000000e+00 : f32
    %138 = vector.broadcast %cst_23 : f32 to vector<2x96xf32>
    %139 = arith.addf %138, %137 : vector<2x96xf32>
    %140 = arith.divf %138, %139 : vector<2x96xf32>
    %141 = vector.extract_strided_slice %134 {offsets = [0, 96], sizes = [2, 32], strides = [1, 1]} : vector<2x128xf32> to vector<2x32xf32>
    %142 = math.tanh %141 : vector<2x32xf32>
    %143 = vector.extract_strided_slice %140 {offsets = [0, 0], sizes = [2, 32], strides = [1, 1]} : vector<2x96xf32> to vector<2x32xf32>
    %144 = vector.extract_strided_slice %140 {offsets = [0, 32], sizes = [2, 32], strides = [1, 1]} : vector<2x96xf32> to vector<2x32xf32>
    %145 = vector.extract_strided_slice %140 {offsets = [0, 64], sizes = [2, 32], strides = [1, 1]} : vector<2x96xf32> to vector<2x32xf32>
    %146 = arith.mulf %144, %128 : vector<2x32xf32>
    %147 = arith.mulf %143, %142 : vector<2x32xf32>
    %148 = arith.addf %146, %147 : vector<2x32xf32>
    %149 = math.tanh %148 : vector<2x32xf32>
    %150 = arith.mulf %145, %149 : vector<2x32xf32>
    %151 = vector.extract_strided_slice %7 {offsets = [0, 7, 0], sizes = [2, 1, 128], strides = [1, 1, 1]} : vector<2x8x128xf32> to vector<2x1x128xf32>
    %152 = vector.shape_cast %151 : vector<2x1x128xf32> to vector<2x128xf32>
    %cst_24 = arith.constant dense<0.000000e+00> : vector<2x128xf32>
    %153 = tpu.matmul %150, %8, %cst_24 {dimension_numbers = #tpu.dot_dimension_numbers<[1], [0], [0], [1], [0, 0, 1, 1], [], []>} : vector<2x32xf32>, vector<32x128xf32>, vector<2x128xf32> -> vector<2x128xf32>
    %154 = arith.addf %152, %153 : vector<2x128xf32>
    %155 = vector.extract_strided_slice %154 {offsets = [0, 0], sizes = [2, 96], strides = [1, 1]} : vector<2x128xf32> to vector<2x96xf32>
    %156 = arith.negf %155 : vector<2x96xf32>
    %157 = math.exp %156 : vector<2x96xf32>
    %cst_25 = arith.constant 1.000000e+00 : f32
    %158 = vector.broadcast %cst_25 : f32 to vector<2x96xf32>
    %159 = arith.addf %158, %157 : vector<2x96xf32>
    %160 = arith.divf %158, %159 : vector<2x96xf32>
    %161 = vector.extract_strided_slice %154 {offsets = [0, 96], sizes = [2, 32], strides = [1, 1]} : vector<2x128xf32> to vector<2x32xf32>
    %162 = math.tanh %161 : vector<2x32xf32>
    %163 = vector.extract_strided_slice %160 {offsets = [0, 0], sizes = [2, 32], strides = [1, 1]} : vector<2x96xf32> to vector<2x32xf32>
    %164 = vector.extract_strided_slice %160 {offsets = [0, 32], sizes = [2, 32], strides = [1, 1]} : vector<2x96xf32> to vector<2x32xf32>
    %165 = vector.extract_strided_slice %160 {offsets = [0, 64], sizes = [2, 32], strides = [1, 1]} : vector<2x96xf32> to vector<2x32xf32>
    %166 = arith.mulf %164, %148 : vector<2x32xf32>
    %167 = arith.mulf %163, %162 : vector<2x32xf32>
    %168 = arith.addf %166, %167 : vector<2x32xf32>
    %169 = math.tanh %168 : vector<2x32xf32>
    %170 = arith.mulf %165, %169 : vector<2x32xf32>
    %c0_26 = arith.constant 0 : index
    %c0_27 = arith.constant 0 : index
    %171 = vector.load %arg5[%c0_26, %c0_27] : memref<32x16xf32, #tpu.memory_space<vmem>>, vector<32x16xf32>
    %cst_28 = arith.constant dense<0.000000e+00> : vector<2x16xf32>
    %172 = tpu.matmul %170, %171, %cst_28 {dimension_numbers = #tpu.dot_dimension_numbers<[1], [0], [0], [1], [0, 0, 1, 1], [], []>} : vector<2x32xf32>, vector<32x16xf32>, vector<2x16xf32> -> vector<2x16xf32>
    %c0_29 = arith.constant 0 : index
    %c0_30 = arith.constant 0 : index
    %173 = vector.load %arg7[%c0_29, %c0_30] : memref<1x16xf32, #tpu.memory_space<vmem>>, vector<1x16xf32>
    %174 = vector.broadcast %173 : vector<1x16xf32> to vector<2x16xf32>
    %175 = arith.addf %172, %174 : vector<2x16xf32>
    %c0_31 = arith.constant 0 : index
    %c0_32 = arith.constant 0 : index
    %176 = vector.load %arg6[%c0_31, %c0_32] : memref<4x16xf32, #tpu.memory_space<vmem>>, vector<4x16xf32>
    %cst_33 = arith.constant 0.000000e+00 : f32
    %177 = vector.broadcast %cst_33 : f32 to vector<2x4xf32>
    %cst_34 = arith.constant 0.000000e+00 : f32
    %178 = vector.broadcast %cst_34 : f32 to vector<2x4xf32>
    %179 = vector.extract_strided_slice %177 {offsets = [0, 0], sizes = [2, 1], strides = [1, 1]} : vector<2x4xf32> to vector<2x1xf32>
    %180 = vector.extract_strided_slice %176 {offsets = [0, 0], sizes = [1, 16], strides = [1, 1]} : vector<4x16xf32> to vector<1x16xf32>
    %181 = vector.broadcast %179 : vector<2x1xf32> to vector<2x16xf32>
    %182 = vector.broadcast %180 : vector<1x16xf32> to vector<2x16xf32>
    %183 = arith.mulf %181, %182 : vector<2x16xf32>
    %184 = arith.addf %175, %183 : vector<2x16xf32>
    %185 = vector.extract_strided_slice %177 {offsets = [0, 1], sizes = [2, 1], strides = [1, 1]} : vector<2x4xf32> to vector<2x1xf32>
    %186 = vector.extract_strided_slice %176 {offsets = [1, 0], sizes = [1, 16], strides = [1, 1]} : vector<4x16xf32> to vector<1x16xf32>
    %187 = vector.broadcast %185 : vector<2x1xf32> to vector<2x16xf32>
    %188 = vector.broadcast %186 : vector<1x16xf32> to vector<2x16xf32>
    %189 = arith.mulf %187, %188 : vector<2x16xf32>
    %190 = arith.addf %184, %189 : vector<2x16xf32>
    %191 = vector.extract_strided_slice %177 {offsets = [0, 2], sizes = [2, 1], strides = [1, 1]} : vector<2x4xf32> to vector<2x1xf32>
    %192 = vector.extract_strided_slice %176 {offsets = [2, 0], sizes = [1, 16], strides = [1, 1]} : vector<4x16xf32> to vector<1x16xf32>
    %193 = vector.broadcast %191 : vector<2x1xf32> to vector<2x16xf32>
    %194 = vector.broadcast %192 : vector<1x16xf32> to vector<2x16xf32>
    %195 = arith.mulf %193, %194 : vector<2x16xf32>
    %196 = arith.addf %190, %195 : vector<2x16xf32>
    %197 = vector.extract_strided_slice %177 {offsets = [0, 3], sizes = [2, 1], strides = [1, 1]} : vector<2x4xf32> to vector<2x1xf32>
    %198 = vector.extract_strided_slice %176 {offsets = [3, 0], sizes = [1, 16], strides = [1, 1]} : vector<4x16xf32> to vector<1x16xf32>
    %199 = vector.broadcast %197 : vector<2x1xf32> to vector<2x16xf32>
    %200 = vector.broadcast %198 : vector<1x16xf32> to vector<2x16xf32>
    %201 = arith.mulf %199, %200 : vector<2x16xf32>
    %202 = arith.addf %196, %201 : vector<2x16xf32>
    %203 = vector.extract_strided_slice %202 {offsets = [0, 0], sizes = [2, 12], strides = [1, 1]} : vector<2x16xf32> to vector<2x12xf32>
    %204 = arith.negf %203 : vector<2x12xf32>
    %205 = math.exp %204 : vector<2x12xf32>
    %cst_35 = arith.constant 1.000000e+00 : f32
    %206 = vector.broadcast %cst_35 : f32 to vector<2x12xf32>
    %207 = arith.addf %206, %205 : vector<2x12xf32>
    %208 = arith.divf %206, %207 : vector<2x12xf32>
    %209 = vector.extract_strided_slice %202 {offsets = [0, 12], sizes = [2, 4], strides = [1, 1]} : vector<2x16xf32> to vector<2x4xf32>
    %210 = math.tanh %209 : vector<2x4xf32>
    %211 = vector.extract_strided_slice %208 {offsets = [0, 0], sizes = [2, 4], strides = [1, 1]} : vector<2x12xf32> to vector<2x4xf32>
    %212 = vector.extract_strided_slice %208 {offsets = [0, 4], sizes = [2, 4], strides = [1, 1]} : vector<2x12xf32> to vector<2x4xf32>
    %213 = vector.extract_strided_slice %208 {offsets = [0, 8], sizes = [2, 4], strides = [1, 1]} : vector<2x12xf32> to vector<2x4xf32>
    %214 = arith.mulf %212, %178 : vector<2x4xf32>
    %215 = arith.mulf %211, %210 : vector<2x4xf32>
    %216 = arith.addf %214, %215 : vector<2x4xf32>
    %217 = math.tanh %216 : vector<2x4xf32>
    %218 = arith.mulf %213, %217 : vector<2x4xf32>
    %219 = vector.extract_strided_slice %218 {offsets = [0, 0], sizes = [2, 1], strides = [1, 1]} : vector<2x4xf32> to vector<2x1xf32>
    %220 = vector.extract_strided_slice %176 {offsets = [0, 0], sizes = [1, 16], strides = [1, 1]} : vector<4x16xf32> to vector<1x16xf32>
    %221 = vector.broadcast %219 : vector<2x1xf32> to vector<2x16xf32>
    %222 = vector.broadcast %220 : vector<1x16xf32> to vector<2x16xf32>
    %223 = arith.mulf %221, %222 : vector<2x16xf32>
    %224 = arith.addf %175, %223 : vector<2x16xf32>
    %225 = vector.extract_strided_slice %218 {offsets = [0, 1], sizes = [2, 1], strides = [1, 1]} : vector<2x4xf32> to vector<2x1xf32>
    %226 = vector.extract_strided_slice %176 {offsets = [1, 0], sizes = [1, 16], strides = [1, 1]} : vector<4x16xf32> to vector<1x16xf32>
    %227 = vector.broadcast %225 : vector<2x1xf32> to vector<2x16xf32>
    %228 = vector.broadcast %226 : vector<1x16xf32> to vector<2x16xf32>
    %229 = arith.mulf %227, %228 : vector<2x16xf32>
    %230 = arith.addf %224, %229 : vector<2x16xf32>
    %231 = vector.extract_strided_slice %218 {offsets = [0, 2], sizes = [2, 1], strides = [1, 1]} : vector<2x4xf32> to vector<2x1xf32>
    %232 = vector.extract_strided_slice %176 {offsets = [2, 0], sizes = [1, 16], strides = [1, 1]} : vector<4x16xf32> to vector<1x16xf32>
    %233 = vector.broadcast %231 : vector<2x1xf32> to vector<2x16xf32>
    %234 = vector.broadcast %232 : vector<1x16xf32> to vector<2x16xf32>
    %235 = arith.mulf %233, %234 : vector<2x16xf32>
    %236 = arith.addf %230, %235 : vector<2x16xf32>
    %237 = vector.extract_strided_slice %218 {offsets = [0, 3], sizes = [2, 1], strides = [1, 1]} : vector<2x4xf32> to vector<2x1xf32>
    %238 = vector.extract_strided_slice %176 {offsets = [3, 0], sizes = [1, 16], strides = [1, 1]} : vector<4x16xf32> to vector<1x16xf32>
    %239 = vector.broadcast %237 : vector<2x1xf32> to vector<2x16xf32>
    %240 = vector.broadcast %238 : vector<1x16xf32> to vector<2x16xf32>
    %241 = arith.mulf %239, %240 : vector<2x16xf32>
    %242 = arith.addf %236, %241 : vector<2x16xf32>
    %243 = vector.extract_strided_slice %242 {offsets = [0, 0], sizes = [2, 12], strides = [1, 1]} : vector<2x16xf32> to vector<2x12xf32>
    %244 = arith.negf %243 : vector<2x12xf32>
    %245 = math.exp %244 : vector<2x12xf32>
    %cst_36 = arith.constant 1.000000e+00 : f32
    %246 = vector.broadcast %cst_36 : f32 to vector<2x12xf32>
    %247 = arith.addf %246, %245 : vector<2x12xf32>
    %248 = arith.divf %246, %247 : vector<2x12xf32>
    %249 = vector.extract_strided_slice %242 {offsets = [0, 12], sizes = [2, 4], strides = [1, 1]} : vector<2x16xf32> to vector<2x4xf32>
    %250 = math.tanh %249 : vector<2x4xf32>
    %251 = vector.extract_strided_slice %248 {offsets = [0, 0], sizes = [2, 4], strides = [1, 1]} : vector<2x12xf32> to vector<2x4xf32>
    %252 = vector.extract_strided_slice %248 {offsets = [0, 4], sizes = [2, 4], strides = [1, 1]} : vector<2x12xf32> to vector<2x4xf32>
    %253 = vector.extract_strided_slice %248 {offsets = [0, 8], sizes = [2, 4], strides = [1, 1]} : vector<2x12xf32> to vector<2x4xf32>
    %254 = arith.mulf %252, %216 : vector<2x4xf32>
    %255 = arith.mulf %251, %250 : vector<2x4xf32>
    %256 = arith.addf %254, %255 : vector<2x4xf32>
    %257 = math.tanh %256 : vector<2x4xf32>
    %258 = arith.mulf %253, %257 : vector<2x4xf32>
    %259 = vector.extract_strided_slice %258 {offsets = [0, 0], sizes = [2, 1], strides = [1, 1]} : vector<2x4xf32> to vector<2x1xf32>
    %260 = vector.extract_strided_slice %176 {offsets = [0, 0], sizes = [1, 16], strides = [1, 1]} : vector<4x16xf32> to vector<1x16xf32>
    %261 = vector.broadcast %259 : vector<2x1xf32> to vector<2x16xf32>
    %262 = vector.broadcast %260 : vector<1x16xf32> to vector<2x16xf32>
    %263 = arith.mulf %261, %262 : vector<2x16xf32>
    %264 = arith.addf %175, %263 : vector<2x16xf32>
    %265 = vector.extract_strided_slice %258 {offsets = [0, 1], sizes = [2, 1], strides = [1, 1]} : vector<2x4xf32> to vector<2x1xf32>
    %266 = vector.extract_strided_slice %176 {offsets = [1, 0], sizes = [1, 16], strides = [1, 1]} : vector<4x16xf32> to vector<1x16xf32>
    %267 = vector.broadcast %265 : vector<2x1xf32> to vector<2x16xf32>
    %268 = vector.broadcast %266 : vector<1x16xf32> to vector<2x16xf32>
    %269 = arith.mulf %267, %268 : vector<2x16xf32>
    %270 = arith.addf %264, %269 : vector<2x16xf32>
    %271 = vector.extract_strided_slice %258 {offsets = [0, 2], sizes = [2, 1], strides = [1, 1]} : vector<2x4xf32> to vector<2x1xf32>
    %272 = vector.extract_strided_slice %176 {offsets = [2, 0], sizes = [1, 16], strides = [1, 1]} : vector<4x16xf32> to vector<1x16xf32>
    %273 = vector.broadcast %271 : vector<2x1xf32> to vector<2x16xf32>
    %274 = vector.broadcast %272 : vector<1x16xf32> to vector<2x16xf32>
    %275 = arith.mulf %273, %274 : vector<2x16xf32>
    %276 = arith.addf %270, %275 : vector<2x16xf32>
    %277 = vector.extract_strided_slice %258 {offsets = [0, 3], sizes = [2, 1], strides = [1, 1]} : vector<2x4xf32> to vector<2x1xf32>
    %278 = vector.extract_strided_slice %176 {offsets = [3, 0], sizes = [1, 16], strides = [1, 1]} : vector<4x16xf32> to vector<1x16xf32>
    %279 = vector.broadcast %277 : vector<2x1xf32> to vector<2x16xf32>
    %280 = vector.broadcast %278 : vector<1x16xf32> to vector<2x16xf32>
    %281 = arith.mulf %279, %280 : vector<2x16xf32>
    %282 = arith.addf %276, %281 : vector<2x16xf32>
    %283 = vector.extract_strided_slice %282 {offsets = [0, 0], sizes = [2, 12], strides = [1, 1]} : vector<2x16xf32> to vector<2x12xf32>
    %284 = arith.negf %283 : vector<2x12xf32>
    %285 = math.exp %284 : vector<2x12xf32>
    %cst_37 = arith.constant 1.000000e+00 : f32
    %286 = vector.broadcast %cst_37 : f32 to vector<2x12xf32>
    %287 = arith.addf %286, %285 : vector<2x12xf32>
    %288 = arith.divf %286, %287 : vector<2x12xf32>
    %289 = vector.extract_strided_slice %282 {offsets = [0, 12], sizes = [2, 4], strides = [1, 1]} : vector<2x16xf32> to vector<2x4xf32>
    %290 = math.tanh %289 : vector<2x4xf32>
    %291 = vector.extract_strided_slice %288 {offsets = [0, 0], sizes = [2, 4], strides = [1, 1]} : vector<2x12xf32> to vector<2x4xf32>
    %292 = vector.extract_strided_slice %288 {offsets = [0, 4], sizes = [2, 4], strides = [1, 1]} : vector<2x12xf32> to vector<2x4xf32>
    %293 = vector.extract_strided_slice %288 {offsets = [0, 8], sizes = [2, 4], strides = [1, 1]} : vector<2x12xf32> to vector<2x4xf32>
    %294 = arith.mulf %292, %256 : vector<2x4xf32>
    %295 = arith.mulf %291, %290 : vector<2x4xf32>
    %296 = arith.addf %294, %295 : vector<2x4xf32>
    %297 = math.tanh %296 : vector<2x4xf32>
    %298 = arith.mulf %293, %297 : vector<2x4xf32>
    %299 = vector.extract_strided_slice %298 {offsets = [0, 0], sizes = [2, 1], strides = [1, 1]} : vector<2x4xf32> to vector<2x1xf32>
    %300 = vector.extract_strided_slice %176 {offsets = [0, 0], sizes = [1, 16], strides = [1, 1]} : vector<4x16xf32> to vector<1x16xf32>
    %301 = vector.broadcast %299 : vector<2x1xf32> to vector<2x16xf32>
    %302 = vector.broadcast %300 : vector<1x16xf32> to vector<2x16xf32>
    %303 = arith.mulf %301, %302 : vector<2x16xf32>
    %304 = arith.addf %175, %303 : vector<2x16xf32>
    %305 = vector.extract_strided_slice %298 {offsets = [0, 1], sizes = [2, 1], strides = [1, 1]} : vector<2x4xf32> to vector<2x1xf32>
    %306 = vector.extract_strided_slice %176 {offsets = [1, 0], sizes = [1, 16], strides = [1, 1]} : vector<4x16xf32> to vector<1x16xf32>
    %307 = vector.broadcast %305 : vector<2x1xf32> to vector<2x16xf32>
    %308 = vector.broadcast %306 : vector<1x16xf32> to vector<2x16xf32>
    %309 = arith.mulf %307, %308 : vector<2x16xf32>
    %310 = arith.addf %304, %309 : vector<2x16xf32>
    %311 = vector.extract_strided_slice %298 {offsets = [0, 2], sizes = [2, 1], strides = [1, 1]} : vector<2x4xf32> to vector<2x1xf32>
    %312 = vector.extract_strided_slice %176 {offsets = [2, 0], sizes = [1, 16], strides = [1, 1]} : vector<4x16xf32> to vector<1x16xf32>
    %313 = vector.broadcast %311 : vector<2x1xf32> to vector<2x16xf32>
    %314 = vector.broadcast %312 : vector<1x16xf32> to vector<2x16xf32>
    %315 = arith.mulf %313, %314 : vector<2x16xf32>
    %316 = arith.addf %310, %315 : vector<2x16xf32>
    %317 = vector.extract_strided_slice %298 {offsets = [0, 3], sizes = [2, 1], strides = [1, 1]} : vector<2x4xf32> to vector<2x1xf32>
    %318 = vector.extract_strided_slice %176 {offsets = [3, 0], sizes = [1, 16], strides = [1, 1]} : vector<4x16xf32> to vector<1x16xf32>
    %319 = vector.broadcast %317 : vector<2x1xf32> to vector<2x16xf32>
    %320 = vector.broadcast %318 : vector<1x16xf32> to vector<2x16xf32>
    %321 = arith.mulf %319, %320 : vector<2x16xf32>
    %322 = arith.addf %316, %321 : vector<2x16xf32>
    %323 = vector.extract_strided_slice %322 {offsets = [0, 0], sizes = [2, 12], strides = [1, 1]} : vector<2x16xf32> to vector<2x12xf32>
    %324 = arith.negf %323 : vector<2x12xf32>
    %325 = math.exp %324 : vector<2x12xf32>
    %cst_38 = arith.constant 1.000000e+00 : f32
    %326 = vector.broadcast %cst_38 : f32 to vector<2x12xf32>
    %327 = arith.addf %326, %325 : vector<2x12xf32>
    %328 = arith.divf %326, %327 : vector<2x12xf32>
    %329 = vector.extract_strided_slice %322 {offsets = [0, 12], sizes = [2, 4], strides = [1, 1]} : vector<2x16xf32> to vector<2x4xf32>
    %330 = math.tanh %329 : vector<2x4xf32>
    %331 = vector.extract_strided_slice %328 {offsets = [0, 0], sizes = [2, 4], strides = [1, 1]} : vector<2x12xf32> to vector<2x4xf32>
    %332 = vector.extract_strided_slice %328 {offsets = [0, 4], sizes = [2, 4], strides = [1, 1]} : vector<2x12xf32> to vector<2x4xf32>
    %333 = vector.extract_strided_slice %328 {offsets = [0, 8], sizes = [2, 4], strides = [1, 1]} : vector<2x12xf32> to vector<2x4xf32>
    %334 = arith.mulf %332, %296 : vector<2x4xf32>
    %335 = arith.mulf %331, %330 : vector<2x4xf32>
    %336 = arith.addf %334, %335 : vector<2x4xf32>
    %337 = math.tanh %336 : vector<2x4xf32>
    %338 = arith.mulf %333, %337 : vector<2x4xf32>
    %339 = vector.extract_strided_slice %338 {offsets = [0, 0], sizes = [2, 1], strides = [1, 1]} : vector<2x4xf32> to vector<2x1xf32>
    %340 = vector.extract_strided_slice %176 {offsets = [0, 0], sizes = [1, 16], strides = [1, 1]} : vector<4x16xf32> to vector<1x16xf32>
    %341 = vector.broadcast %339 : vector<2x1xf32> to vector<2x16xf32>
    %342 = vector.broadcast %340 : vector<1x16xf32> to vector<2x16xf32>
    %343 = arith.mulf %341, %342 : vector<2x16xf32>
    %344 = arith.addf %175, %343 : vector<2x16xf32>
    %345 = vector.extract_strided_slice %338 {offsets = [0, 1], sizes = [2, 1], strides = [1, 1]} : vector<2x4xf32> to vector<2x1xf32>
    %346 = vector.extract_strided_slice %176 {offsets = [1, 0], sizes = [1, 16], strides = [1, 1]} : vector<4x16xf32> to vector<1x16xf32>
    %347 = vector.broadcast %345 : vector<2x1xf32> to vector<2x16xf32>
    %348 = vector.broadcast %346 : vector<1x16xf32> to vector<2x16xf32>
    %349 = arith.mulf %347, %348 : vector<2x16xf32>
    %350 = arith.addf %344, %349 : vector<2x16xf32>
    %351 = vector.extract_strided_slice %338 {offsets = [0, 2], sizes = [2, 1], strides = [1, 1]} : vector<2x4xf32> to vector<2x1xf32>
    %352 = vector.extract_strided_slice %176 {offsets = [2, 0], sizes = [1, 16], strides = [1, 1]} : vector<4x16xf32> to vector<1x16xf32>
    %353 = vector.broadcast %351 : vector<2x1xf32> to vector<2x16xf32>
    %354 = vector.broadcast %352 : vector<1x16xf32> to vector<2x16xf32>
    %355 = arith.mulf %353, %354 : vector<2x16xf32>
    %356 = arith.addf %350, %355 : vector<2x16xf32>
    %357 = vector.extract_strided_slice %338 {offsets = [0, 3], sizes = [2, 1], strides = [1, 1]} : vector<2x4xf32> to vector<2x1xf32>
    %358 = vector.extract_strided_slice %176 {offsets = [3, 0], sizes = [1, 16], strides = [1, 1]} : vector<4x16xf32> to vector<1x16xf32>
    %359 = vector.broadcast %357 : vector<2x1xf32> to vector<2x16xf32>
    %360 = vector.broadcast %358 : vector<1x16xf32> to vector<2x16xf32>
    %361 = arith.mulf %359, %360 : vector<2x16xf32>
    %362 = arith.addf %356, %361 : vector<2x16xf32>
    %363 = vector.extract_strided_slice %362 {offsets = [0, 0], sizes = [2, 12], strides = [1, 1]} : vector<2x16xf32> to vector<2x12xf32>
    %364 = arith.negf %363 : vector<2x12xf32>
    %365 = math.exp %364 : vector<2x12xf32>
    %cst_39 = arith.constant 1.000000e+00 : f32
    %366 = vector.broadcast %cst_39 : f32 to vector<2x12xf32>
    %367 = arith.addf %366, %365 : vector<2x12xf32>
    %368 = arith.divf %366, %367 : vector<2x12xf32>
    %369 = vector.extract_strided_slice %362 {offsets = [0, 12], sizes = [2, 4], strides = [1, 1]} : vector<2x16xf32> to vector<2x4xf32>
    %370 = math.tanh %369 : vector<2x4xf32>
    %371 = vector.extract_strided_slice %368 {offsets = [0, 0], sizes = [2, 4], strides = [1, 1]} : vector<2x12xf32> to vector<2x4xf32>
    %372 = vector.extract_strided_slice %368 {offsets = [0, 4], sizes = [2, 4], strides = [1, 1]} : vector<2x12xf32> to vector<2x4xf32>
    %373 = vector.extract_strided_slice %368 {offsets = [0, 8], sizes = [2, 4], strides = [1, 1]} : vector<2x12xf32> to vector<2x4xf32>
    %374 = arith.mulf %372, %336 : vector<2x4xf32>
    %375 = arith.mulf %371, %370 : vector<2x4xf32>
    %376 = arith.addf %374, %375 : vector<2x4xf32>
    %377 = math.tanh %376 : vector<2x4xf32>
    %378 = arith.mulf %373, %377 : vector<2x4xf32>
    %379 = vector.extract_strided_slice %378 {offsets = [0, 0], sizes = [2, 1], strides = [1, 1]} : vector<2x4xf32> to vector<2x1xf32>
    %380 = vector.extract_strided_slice %176 {offsets = [0, 0], sizes = [1, 16], strides = [1, 1]} : vector<4x16xf32> to vector<1x16xf32>
    %381 = vector.broadcast %379 : vector<2x1xf32> to vector<2x16xf32>
    %382 = vector.broadcast %380 : vector<1x16xf32> to vector<2x16xf32>
    %383 = arith.mulf %381, %382 : vector<2x16xf32>
    %384 = arith.addf %175, %383 : vector<2x16xf32>
    %385 = vector.extract_strided_slice %378 {offsets = [0, 1], sizes = [2, 1], strides = [1, 1]} : vector<2x4xf32> to vector<2x1xf32>
    %386 = vector.extract_strided_slice %176 {offsets = [1, 0], sizes = [1, 16], strides = [1, 1]} : vector<4x16xf32> to vector<1x16xf32>
    %387 = vector.broadcast %385 : vector<2x1xf32> to vector<2x16xf32>
    %388 = vector.broadcast %386 : vector<1x16xf32> to vector<2x16xf32>
    %389 = arith.mulf %387, %388 : vector<2x16xf32>
    %390 = arith.addf %384, %389 : vector<2x16xf32>
    %391 = vector.extract_strided_slice %378 {offsets = [0, 2], sizes = [2, 1], strides = [1, 1]} : vector<2x4xf32> to vector<2x1xf32>
    %392 = vector.extract_strided_slice %176 {offsets = [2, 0], sizes = [1, 16], strides = [1, 1]} : vector<4x16xf32> to vector<1x16xf32>
    %393 = vector.broadcast %391 : vector<2x1xf32> to vector<2x16xf32>
    %394 = vector.broadcast %392 : vector<1x16xf32> to vector<2x16xf32>
    %395 = arith.mulf %393, %394 : vector<2x16xf32>
    %396 = arith.addf %390, %395 : vector<2x16xf32>
    %397 = vector.extract_strided_slice %378 {offsets = [0, 3], sizes = [2, 1], strides = [1, 1]} : vector<2x4xf32> to vector<2x1xf32>
    %398 = vector.extract_strided_slice %176 {offsets = [3, 0], sizes = [1, 16], strides = [1, 1]} : vector<4x16xf32> to vector<1x16xf32>
    %399 = vector.broadcast %397 : vector<2x1xf32> to vector<2x16xf32>
    %400 = vector.broadcast %398 : vector<1x16xf32> to vector<2x16xf32>
    %401 = arith.mulf %399, %400 : vector<2x16xf32>
    %402 = arith.addf %396, %401 : vector<2x16xf32>
    %403 = vector.extract_strided_slice %402 {offsets = [0, 0], sizes = [2, 12], strides = [1, 1]} : vector<2x16xf32> to vector<2x12xf32>
    %404 = arith.negf %403 : vector<2x12xf32>
    %405 = math.exp %404 : vector<2x12xf32>
    %cst_40 = arith.constant 1.000000e+00 : f32
    %406 = vector.broadcast %cst_40 : f32 to vector<2x12xf32>
    %407 = arith.addf %406, %405 : vector<2x12xf32>
    %408 = arith.divf %406, %407 : vector<2x12xf32>
    %409 = vector.extract_strided_slice %402 {offsets = [0, 12], sizes = [2, 4], strides = [1, 1]} : vector<2x16xf32> to vector<2x4xf32>
    %410 = math.tanh %409 : vector<2x4xf32>
    %411 = vector.extract_strided_slice %408 {offsets = [0, 0], sizes = [2, 4], strides = [1, 1]} : vector<2x12xf32> to vector<2x4xf32>
    %412 = vector.extract_strided_slice %408 {offsets = [0, 4], sizes = [2, 4], strides = [1, 1]} : vector<2x12xf32> to vector<2x4xf32>
    %413 = vector.extract_strided_slice %408 {offsets = [0, 8], sizes = [2, 4], strides = [1, 1]} : vector<2x12xf32> to vector<2x4xf32>
    %414 = arith.mulf %412, %376 : vector<2x4xf32>
    %415 = arith.mulf %411, %410 : vector<2x4xf32>
    %416 = arith.addf %414, %415 : vector<2x4xf32>
    %417 = math.tanh %416 : vector<2x4xf32>
    %418 = arith.mulf %413, %417 : vector<2x4xf32>
    %419 = vector.extract_strided_slice %418 {offsets = [0, 0], sizes = [2, 1], strides = [1, 1]} : vector<2x4xf32> to vector<2x1xf32>
    %420 = vector.extract_strided_slice %176 {offsets = [0, 0], sizes = [1, 16], strides = [1, 1]} : vector<4x16xf32> to vector<1x16xf32>
    %421 = vector.broadcast %419 : vector<2x1xf32> to vector<2x16xf32>
    %422 = vector.broadcast %420 : vector<1x16xf32> to vector<2x16xf32>
    %423 = arith.mulf %421, %422 : vector<2x16xf32>
    %424 = arith.addf %175, %423 : vector<2x16xf32>
    %425 = vector.extract_strided_slice %418 {offsets = [0, 1], sizes = [2, 1], strides = [1, 1]} : vector<2x4xf32> to vector<2x1xf32>
    %426 = vector.extract_strided_slice %176 {offsets = [1, 0], sizes = [1, 16], strides = [1, 1]} : vector<4x16xf32> to vector<1x16xf32>
    %427 = vector.broadcast %425 : vector<2x1xf32> to vector<2x16xf32>
    %428 = vector.broadcast %426 : vector<1x16xf32> to vector<2x16xf32>
    %429 = arith.mulf %427, %428 : vector<2x16xf32>
    %430 = arith.addf %424, %429 : vector<2x16xf32>
    %431 = vector.extract_strided_slice %418 {offsets = [0, 2], sizes = [2, 1], strides = [1, 1]} : vector<2x4xf32> to vector<2x1xf32>
    %432 = vector.extract_strided_slice %176 {offsets = [2, 0], sizes = [1, 16], strides = [1, 1]} : vector<4x16xf32> to vector<1x16xf32>
    %433 = vector.broadcast %431 : vector<2x1xf32> to vector<2x16xf32>
    %434 = vector.broadcast %432 : vector<1x16xf32> to vector<2x16xf32>
    %435 = arith.mulf %433, %434 : vector<2x16xf32>
    %436 = arith.addf %430, %435 : vector<2x16xf32>
    %437 = vector.extract_strided_slice %418 {offsets = [0, 3], sizes = [2, 1], strides = [1, 1]} : vector<2x4xf32> to vector<2x1xf32>
    %438 = vector.extract_strided_slice %176 {offsets = [3, 0], sizes = [1, 16], strides = [1, 1]} : vector<4x16xf32> to vector<1x16xf32>
    %439 = vector.broadcast %437 : vector<2x1xf32> to vector<2x16xf32>
    %440 = vector.broadcast %438 : vector<1x16xf32> to vector<2x16xf32>
    %441 = arith.mulf %439, %440 : vector<2x16xf32>
    %442 = arith.addf %436, %441 : vector<2x16xf32>
    %443 = vector.extract_strided_slice %442 {offsets = [0, 0], sizes = [2, 12], strides = [1, 1]} : vector<2x16xf32> to vector<2x12xf32>
    %444 = arith.negf %443 : vector<2x12xf32>
    %445 = math.exp %444 : vector<2x12xf32>
    %cst_41 = arith.constant 1.000000e+00 : f32
    %446 = vector.broadcast %cst_41 : f32 to vector<2x12xf32>
    %447 = arith.addf %446, %445 : vector<2x12xf32>
    %448 = arith.divf %446, %447 : vector<2x12xf32>
    %449 = vector.extract_strided_slice %442 {offsets = [0, 12], sizes = [2, 4], strides = [1, 1]} : vector<2x16xf32> to vector<2x4xf32>
    %450 = math.tanh %449 : vector<2x4xf32>
    %451 = vector.extract_strided_slice %448 {offsets = [0, 0], sizes = [2, 4], strides = [1, 1]} : vector<2x12xf32> to vector<2x4xf32>
    %452 = vector.extract_strided_slice %448 {offsets = [0, 4], sizes = [2, 4], strides = [1, 1]} : vector<2x12xf32> to vector<2x4xf32>
    %453 = vector.extract_strided_slice %448 {offsets = [0, 8], sizes = [2, 4], strides = [1, 1]} : vector<2x12xf32> to vector<2x4xf32>
    %454 = arith.mulf %452, %416 : vector<2x4xf32>
    %455 = arith.mulf %451, %450 : vector<2x4xf32>
    %456 = arith.addf %454, %455 : vector<2x4xf32>
    %457 = math.tanh %456 : vector<2x4xf32>
    %458 = arith.mulf %453, %457 : vector<2x4xf32>
    %459 = vector.extract_strided_slice %458 {offsets = [0, 0], sizes = [2, 1], strides = [1, 1]} : vector<2x4xf32> to vector<2x1xf32>
    %460 = vector.extract_strided_slice %176 {offsets = [0, 0], sizes = [1, 16], strides = [1, 1]} : vector<4x16xf32> to vector<1x16xf32>
    %461 = vector.broadcast %459 : vector<2x1xf32> to vector<2x16xf32>
    %462 = vector.broadcast %460 : vector<1x16xf32> to vector<2x16xf32>
    %463 = arith.mulf %461, %462 : vector<2x16xf32>
    %464 = arith.addf %175, %463 : vector<2x16xf32>
    %465 = vector.extract_strided_slice %458 {offsets = [0, 1], sizes = [2, 1], strides = [1, 1]} : vector<2x4xf32> to vector<2x1xf32>
    %466 = vector.extract_strided_slice %176 {offsets = [1, 0], sizes = [1, 16], strides = [1, 1]} : vector<4x16xf32> to vector<1x16xf32>
    %467 = vector.broadcast %465 : vector<2x1xf32> to vector<2x16xf32>
    %468 = vector.broadcast %466 : vector<1x16xf32> to vector<2x16xf32>
    %469 = arith.mulf %467, %468 : vector<2x16xf32>
    %470 = arith.addf %464, %469 : vector<2x16xf32>
    %471 = vector.extract_strided_slice %458 {offsets = [0, 2], sizes = [2, 1], strides = [1, 1]} : vector<2x4xf32> to vector<2x1xf32>
    %472 = vector.extract_strided_slice %176 {offsets = [2, 0], sizes = [1, 16], strides = [1, 1]} : vector<4x16xf32> to vector<1x16xf32>
    %473 = vector.broadcast %471 : vector<2x1xf32> to vector<2x16xf32>
    %474 = vector.broadcast %472 : vector<1x16xf32> to vector<2x16xf32>
    %475 = arith.mulf %473, %474 : vector<2x16xf32>
    %476 = arith.addf %470, %475 : vector<2x16xf32>
    %477 = vector.extract_strided_slice %458 {offsets = [0, 3], sizes = [2, 1], strides = [1, 1]} : vector<2x4xf32> to vector<2x1xf32>
    %478 = vector.extract_strided_slice %176 {offsets = [3, 0], sizes = [1, 16], strides = [1, 1]} : vector<4x16xf32> to vector<1x16xf32>
    %479 = vector.broadcast %477 : vector<2x1xf32> to vector<2x16xf32>
    %480 = vector.broadcast %478 : vector<1x16xf32> to vector<2x16xf32>
    %481 = arith.mulf %479, %480 : vector<2x16xf32>
    %482 = arith.addf %476, %481 : vector<2x16xf32>
    %483 = vector.extract_strided_slice %482 {offsets = [0, 0], sizes = [2, 12], strides = [1, 1]} : vector<2x16xf32> to vector<2x12xf32>
    %484 = arith.negf %483 : vector<2x12xf32>
    %485 = math.exp %484 : vector<2x12xf32>
    %cst_42 = arith.constant 1.000000e+00 : f32
    %486 = vector.broadcast %cst_42 : f32 to vector<2x12xf32>
    %487 = arith.addf %486, %485 : vector<2x12xf32>
    %488 = arith.divf %486, %487 : vector<2x12xf32>
    %489 = vector.extract_strided_slice %482 {offsets = [0, 12], sizes = [2, 4], strides = [1, 1]} : vector<2x16xf32> to vector<2x4xf32>
    %490 = math.tanh %489 : vector<2x4xf32>
    %491 = vector.extract_strided_slice %488 {offsets = [0, 0], sizes = [2, 4], strides = [1, 1]} : vector<2x12xf32> to vector<2x4xf32>
    %492 = vector.extract_strided_slice %488 {offsets = [0, 4], sizes = [2, 4], strides = [1, 1]} : vector<2x12xf32> to vector<2x4xf32>
    %493 = vector.extract_strided_slice %488 {offsets = [0, 8], sizes = [2, 4], strides = [1, 1]} : vector<2x12xf32> to vector<2x4xf32>
    %494 = arith.mulf %492, %456 : vector<2x4xf32>
    %495 = arith.mulf %491, %490 : vector<2x4xf32>
    %496 = arith.addf %494, %495 : vector<2x4xf32>
    %497 = math.tanh %496 : vector<2x4xf32>
    %498 = arith.mulf %493, %497 : vector<2x4xf32>
    %499 = tpu.concatenate %218, %258, %298, %338, %378, %418, %458, %498 in 1 : vector<2x4xf32>, vector<2x4xf32>, vector<2x4xf32>, vector<2x4xf32>, vector<2x4xf32>, vector<2x4xf32>, vector<2x4xf32>, vector<2x4xf32> -> vector<2x32xf32>
    %c0_43 = arith.constant 0 : index
    %c0_44 = arith.constant 0 : index
    %500 = vector.load %arg8[%c0_43, %c0_44] : memref<2x32xf32, #tpu.memory_space<vmem>>, vector<2x32xf32>
    tpu.vector_store %arg8[%c0_43, %c0_44], %499 {strides = array<i32>} : memref<2x32xf32, #tpu.memory_space<vmem>>, vector<2x32xf32>,
    return
  }
  func.func @transform_0(%arg0: i32) -> (i32, i32, i32) {
    %c0_i32 = arith.constant 0 : i32
    %c0_i32_0 = arith.constant 0 : i32
    %c0_i32_1 = arith.constant 0 : i32
    return %arg0, %c0_i32, %c0_i32_0 : i32, i32, i32
  }
  func.func @transform_1(%arg0: i32) -> (i32, i32) {
    %c0_i32 = arith.constant 0 : i32
    %c0_i32_0 = arith.constant 0 : i32
    %c0_i32_1 = arith.constant 0 : i32
    return %c0_i32, %c0_i32_0 : i32, i32
  }
  func.func @transform_2(%arg0: i32) -> (i32, i32) {
    %c0_i32 = arith.constant 0 : i32
    %c0_i32_0 = arith.constant 0 : i32
    %c0_i32_1 = arith.constant 0 : i32
    return %c0_i32, %c0_i32_0 : i32, i32
  }
  func.func @transform_3(%arg0: i32) -> (i32, i32) {
    %c0_i32 = arith.constant 0 : i32
    %c0_i32_0 = arith.constant 0 : i32
    %c0_i32_1 = arith.constant 0 : i32
    return %c0_i32, %c0_i32_0 : i32, i32
  }
  func.func @transform_4(%arg0: i32) -> (i32, i32) {
    %c0_i32 = arith.constant 0 : i32
    %c0_i32_0 = arith.constant 0 : i32
    %c0_i32_1 = arith.constant 0 : i32
    return %c0_i32, %c0_i32_0 : i32, i32
  }
  func.func @transform_5(%arg0: i32) -> (i32, i32) {
    %c0_i32 = arith.constant 0 : i32
    %c0_i32_0 = arith.constant 0 : i32
    %c0_i32_1 = arith.constant 0 : i32
    return %c0_i32, %c0_i32_0 : i32, i32
  }
  func.func @transform_6(%arg0: i32) -> (i32, i32) {
    %c0_i32 = arith.constant 0 : i32
    %c0_i32_0 = arith.constant 0 : i32
    %c0_i32_1 = arith.constant 0 : i32
    return %c0_i32, %c0_i32_0 : i32, i32
  }
  func.func @transform_7(%arg0: i32) -> (i32, i32) {
    %c0_i32 = arith.constant 0 : i32
    %c0_i32_0 = arith.constant 0 : i32
    return %arg0, %c0_i32 : i32, i32
  }
}

</mosaic_0001>

<llo_original>
// kernel: lstm_autoencoder_forward.1
$region0: #{lstm_autoencoder_forward.1}
  #allocation0 [shape = 'u32[]', space=smem, size = 0x4, offset = 0x4, fixed_abs, tag = 'smem constant byte address 0x4 - core index']
  #allocation1 [shape = 'u32[72,128]{1,0:T(1,128)}', space=vmem, size = 0x9000, scoped, tag = 'internal scratch']
  %s0 = inlined_call_operand.vmem [shape: f32[2,8,4], index: 0, kind: input, shape index: {}]
  %s1 = inlined_call_operand.vmem [shape: f32[4,128], index: 1, kind: input, shape index: {}]
  %s2 = inlined_call_operand.vmem [shape: f32[1,128], index: 2, kind: input, shape index: {}]
  %s3 = inlined_call_operand.vmem [shape: f32[32,128], index: 3, kind: input, shape index: {}]
  %s4 = inlined_call_operand.vmem [shape: f32[32,16], index: 4, kind: input, shape index: {}]
  %s5 = inlined_call_operand.vmem [shape: f32[4,16], index: 5, kind: input, shape index: {}]
  %s6 = inlined_call_operand.vmem [shape: f32[1,16], index: 6, kind: input, shape index: {}]
  %s7 = inlined_call_operand.vmem [shape: f32[2,32], index: 7, kind: output, shape index: {}]
  %s8 = sld [smem:[#allocation0]]
  $region38: #{lstm_autoencoder_forward.1} parent=0
    _
  %s10 = ssub.s32 1, %s8
  %s11 = scalar_select 0, %s10, %s8
  // Predicated region
  $region2: #{lstm_autoencoder_forward.1} parent=0 // pred_check
    _
  $region3: #{lstm_autoencoder_forward.1} parent=0 // pred_check_branch
    %13 = sbr.rel (0) target = $region5
  $region4: #{lstm_autoencoder_forward.1} parent=0 // pred_region
    _
  $region5: #{lstm_autoencoder_forward.1} parent=0 // pred_fallthru
    _
  // Predicated region
  $region6: #{lstm_autoencoder_forward.1} parent=0 // pred_check
    _
  $region7: #{lstm_autoencoder_forward.1} parent=0 // pred_check_branch
    %15 = sbr.rel (0) target = $region9
  $region8: #{lstm_autoencoder_forward.1} parent=0 // pred_region
    _
  $region9: #{lstm_autoencoder_forward.1} parent=0 // pred_fallthru
    _
  // Predicated region
  $region10: #{lstm_autoencoder_forward.1} parent=0 // pred_check
    _
  $region11: #{lstm_autoencoder_forward.1} parent=0 // pred_check_branch
    %17 = sbr.rel (0) target = $region13
  $region12: #{lstm_autoencoder_forward.1} parent=0 // pred_region
    _
  $region13: #{lstm_autoencoder_forward.1} parent=0 // pred_fallthru
    _
  // Predicated region
  $region14: #{lstm_autoencoder_forward.1} parent=0 // pred_check
    _
  $region15: #{lstm_autoencoder_forward.1} parent=0 // pred_check_branch
    %19 = sbr.rel (0) target = $region17
  $region16: #{lstm_autoencoder_forward.1} parent=0 // pred_region
    _
  $region17: #{lstm_autoencoder_forward.1} parent=0 // pred_fallthru
    _
  // Predicated region
  $region18: #{lstm_autoencoder_forward.1} parent=0 // pred_check
    _
  $region19: #{lstm_autoencoder_forward.1} parent=0 // pred_check_branch
    %21 = sbr.rel (0) target = $region21
  $region20: #{lstm_autoencoder_forward.1} parent=0 // pred_region
    _
  $region21: #{lstm_autoencoder_forward.1} parent=0 // pred_fallthru
    _
  // Predicated region
  $region22: #{lstm_autoencoder_forward.1} parent=0 // pred_check
    _
  $region23: #{lstm_autoencoder_forward.1} parent=0 // pred_check_branch
    %23 = sbr.rel (0) target = $region25
  $region24: #{lstm_autoencoder_forward.1} parent=0 // pred_region
    _
  $region25: #{lstm_autoencoder_forward.1} parent=0 // pred_fallthru
    _
  // Predicated region
  $region26: #{lstm_autoencoder_forward.1} parent=0 // pred_check
    _
  $region27: #{lstm_autoencoder_forward.1} parent=0 // pred_check_branch
    %25 = sbr.rel (0) target = $region29
  $region28: #{lstm_autoencoder_forward.1} parent=0 // pred_region
    _
  $region29: #{lstm_autoencoder_forward.1} parent=0 // pred_fallthru
    _
  %v26 = vld [vmem:[%s0] sm:$0xff]
  %v27 = vld [vmem:[%s0 + $0x8] sm:$0xff]
  %v28 = vld [vmem:[%s1] sm:$0xf]
  %v29 = vld [vmem:[%s2] sm:$0x1]
  %v31 = vperm.slane %v29, 0
  %vm33 = vcmask 31744
  %v35 = vsel %vm33, %v26, 0
  %v38 = vsel %vm33, %v27, 0
  %vm40 = vcmask 1043456
  %v42 = vsel %vm40, %v28, 0
  %44 = vmatpush.msra.mxu0 0.0
  %45 = vmatpush.msra.mxu0 0.0
  %46 = vmatpush.msra.mxu0 0.0
  %47 = vmatpush.msra.mxu0 0.0
  %48 = vmatpush.msra.mxu0 0.0
  %49 = vmatpush.msra.mxu0 0.0
  %50 = vmatpush.msra.mxu0 0.0
  %51 = vmatpush.msra.mxu0 0.0
  %52 = vmatpush.msra.mxu0 0.0
  %53 = vmatpush.msra.mxu0 0.0
  %54 = vmatpush.msra.mxu0 0.0
  %55 = vmatpush.msra.mxu0 0.0
  %56 = vmatpush.msra.mxu0 0.0
  %57 = vmatpush.msra.mxu0 0.0
  %58 = vmatpush.msra.mxu0 0.0
  %59 = vmatpush.msra.mxu0 %v42
  %60 = vmatmul.f32.gmra.mxu0 %v35
  %v61 = vpop.f32.mrf.mxu0
  %v62 = vadd.f32 %v31, %v61
  %63 = vmatmul.f32.gmra.mxu0 %v38
  %v64 = vpop.f32.mrf.mxu0
  %v65 = vadd.f32 %v31, %v64
  %66 = vdwg.mxu0
  %v67 = vld [vmem:[%s3] sm:$0xff]
  %v68 = vld [vmem:[%s3 + $0x8] sm:$0xff]
  %v69 = vld [vmem:[%s3 + $0x10] sm:$0xff]
  %v70 = vld [vmem:[%s3 + $0x18] sm:$0xff]
  %vm71 = vcmask 261120
  %v73 = vsel %vm71, 0.0, 0
  %75 = vmatpush.msra.mxu0 0.0
  %76 = vmatpush.msra.mxu0 0.0
  %77 = vmatpush.msra.mxu0 0.0
  %78 = vmatpush.msra.mxu0 0.0
  %79 = vmatpush.msra.mxu0 0.0
  %80 = vmatpush.msra.mxu0 0.0
  %81 = vmatpush.msra.mxu0 0.0
  %82 = vmatpush.msra.mxu0 0.0
  %83 = vmatpush.msra.mxu0 0.0
  %84 = vmatpush.msra.mxu0 0.0
  %85 = vmatpush.msra.mxu0 0.0
  %86 = vmatpush.msra.mxu0 0.0
  %87 = vmatpush.msra.mxu0 %v70
  %88 = vmatpush.msra.mxu0 %v69
  %89 = vmatpush.msra.mxu0 %v68
  %90 = vmatpush.msra.mxu0 %v67
  %91 = vmatmul.f32.gmra.mxu0 %v73
  %v92 = vpop.f32.mrf.mxu0
  %v93 = vadd.f32 0.0, %v92
  %94 = vdwg.mxu0
  %v96 = vrot.slane %v93, 1
  %v99 = vadd.f32 %v62, %v93
  %v100 = vadd.f32 %v65, %v96
  %v101 = vxor.u32 %v99, 2147483648
  %v102 = vxor.u32 %v100, 2147483648
  %v103 = vmul.f32 %v101, 1.442695
  %v104 = vpow.pop %v103
  %v105 = vmul.f32 %v102, 1.442695
  %v106 = vpow.pop %v105
  %v107 = vadd.f32 %v104, 1.0
  %v108 = vadd.f32 %v106, 1.0
  %v109 = vrcp.pop %v107
  %v110 = vmul.f32 %v107, %v109
  %v111 = vsub.f32 1.0, %v110
  %v112 = vmul.f32 %v109, %v111
  %v113 = vadd.f32 %v109, %v112
  %vm114 = vweird.f32 %v107
  %vm115 = vweird.f32 %v109
  %vm116 = vmor %vm114, %vm115
  %v117 = vsel %vm116, %v109, %v113
  %v118 = vand.u32 2147483647, %v107
  %vm119 = vcmp.eq.f32.partialorder %v118, 8.507059e+37
  %v120 = vand.u32 %v107, 2147483648
  %v121 = vor.u32 1.1754944e-38, %v120
  %v122 = vsel %vm119, %v121, %v117
  %v123 = vmul.f32 1.0, %v122
  %v124 = vrcp.pop %v108
  %v125 = vmul.f32 %v108, %v124
  %v126 = vsub.f32 1.0, %v125
  %v127 = vmul.f32 %v124, %v126
  %v128 = vadd.f32 %v124, %v127
  %vm129 = vweird.f32 %v108
  %vm130 = vweird.f32 %v124
  %vm131 = vmor %vm129, %vm130
  %v132 = vsel %vm131, %v124, %v128
  %v133 = vand.u32 2147483647, %v108
  %vm134 = vcmp.eq.f32.partialorder %v133, 8.507059e+37
  %v135 = vand.u32 %v108, 2147483648
  %v136 = vor.u32 1.1754944e-38, %v135
  %v137 = vsel %vm134, %v136, %v132
  %v138 = vmul.f32 1.0, %v137
  %v139 = vtanh.pop %v99
  %v140 = vtanh.pop %v100
  %v141 = vmul.f32 %v123, 0.0
  %v142 = vmul.f32 %v138, 0.0
  %145 = vrot.lane.b32.xlu0 %v139, 32
  %v146 = vpop.permute.xlu0 %145
  %147 = vrot.lane.b32.xlu0 %v140, 32
  %v148 = vpop.permute.xlu0 %147
  %v151 = vmul.f32 %v123, %v146
  %v152 = vmul.f32 %v138, %v148
  %155 = vrot.lane.b32.xlu0 %v151, 32
  %v156 = vpop.permute.xlu0 %155
  %157 = vrot.lane.b32.xlu0 %v152, 32
  %v158 = vpop.permute.xlu0 %157
  %v161 = vadd.f32 %v141, %v156
  %v162 = vadd.f32 %v142, %v158
  %v163 = vtanh.pop %v161
  %v164 = vtanh.pop %v162
  %167 = vrot.lane.b32.xlu0 %v163, 32
  %v168 = vpop.permute.xlu0 %167
  %169 = vrot.lane.b32.xlu0 %v164, 32
  %v170 = vpop.permute.xlu0 %169
  %v173 = vmul.f32 %v123, %v168
  %v174 = vmul.f32 %v138, %v170
  %v177 = vrot.slane %v174, 7
  %vm178 = vcmask 1041409
  %v179 = vsel %vm178, %v177, %v173
  %180 = vrot.lane.b32.xlu0 %v179, 64
  %v181 = vpop.permute.xlu0 %180
  %v182 = vsel %vm71, %v181, 0
  %184 = vmatpush.msra.mxu0 0.0
  %185 = vmatpush.msra.mxu0 0.0
  %186 = vmatpush.msra.mxu0 0.0
  %187 = vmatpush.msra.mxu0 0.0
  %188 = vmatpush.msra.mxu0 0.0
  %189 = vmatpush.msra.mxu0 0.0
  %190 = vmatpush.msra.mxu0 0.0
  %191 = vmatpush.msra.mxu0 0.0
  %192 = vmatpush.msra.mxu0 0.0
  %193 = vmatpush.msra.mxu0 0.0
  %194 = vmatpush.msra.mxu0 0.0
  %195 = vmatpush.msra.mxu0 0.0
  %196 = vmatpush.msra.mxu0 %v70
  %197 = vmatpush.msra.mxu0 %v69
  %198 = vmatpush.msra.mxu0 %v68
  %199 = vmatpush.msra.mxu0 %v67
  %200 = vmatmul.f32.gmra.mxu0 %v182
  %v201 = vpop.f32.mrf.mxu0
  %v202 = vadd.f32 0.0, %v201
  %203 = vdwg.mxu0
  %v205 = vrot.slane %v202, 7
  %v208 = vadd.f32 %v62, %v205
  %v209 = vadd.f32 %v65, %v202
  %v210 = vxor.u32 %v208, 2147483648
  %v211 = vxor.u32 %v209, 2147483648
  %v212 = vmul.f32 %v210, 1.442695
  %v213 = vpow.pop %v212
  %v214 = vmul.f32 %v211, 1.442695
  %v215 = vpow.pop %v214
  %v216 = vadd.f32 %v213, 1.0
  %v217 = vadd.f32 %v215, 1.0
  %v218 = vrcp.pop %v216
  %v219 = vmul.f32 %v216, %v218
  %v220 = vsub.f32 1.0, %v219
  %v221 = vmul.f32 %v218, %v220
  %v222 = vadd.f32 %v218, %v221
  %vm223 = vweird.f32 %v216
  %vm224 = vweird.f32 %v218
  %vm225 = vmor %vm223, %vm224
  %v226 = vsel %vm225, %v218, %v222
  %v227 = vand.u32 2147483647, %v216
  %vm228 = vcmp.eq.f32.partialorder %v227, 8.507059e+37
  %v229 = vand.u32 %v216, 2147483648
  %v230 = vor.u32 1.1754944e-38, %v229
  %v231 = vsel %vm228, %v230, %v226
  %v232 = vmul.f32 1.0, %v231
  %v233 = vrcp.pop %v217
  %v234 = vmul.f32 %v217, %v233
  %v235 = vsub.f32 1.0, %v234
  %v236 = vmul.f32 %v233, %v235
  %v237 = vadd.f32 %v233, %v236
  %vm238 = vweird.f32 %v217
  %vm239 = vweird.f32 %v233
  %vm240 = vmor %vm238, %vm239
  %v241 = vsel %vm240, %v233, %v237
  %v242 = vand.u32 2147483647, %v217
  %vm243 = vcmp.eq.f32.partialorder %v242, 8.507059e+37
  %v244 = vand.u32 %v217, 2147483648
  %v245 = vor.u32 1.1754944e-38, %v244
  %v246 = vsel %vm243, %v245, %v241
  %v247 = vmul.f32 1.0, %v246
  %v248 = vtanh.pop %v208
  %v249 = vtanh.pop %v209
  %v252 = vrot.slane %v161, 7
  %v253 = vrot.slane %v162, 7
  %v256 = vmul.f32 %v232, %v252
  %v257 = vmul.f32 %v247, %v253
  %260 = vrot.lane.b32.xlu0 %v248, 32
  %v261 = vpop.permute.xlu0 %260
  %262 = vrot.lane.b32.xlu0 %v249, 32
  %v263 = vpop.permute.xlu0 %262
  %v266 = vmul.f32 %v232, %v261
  %v267 = vmul.f32 %v247, %v263
  %270 = vrot.lane.b32.xlu0 %v266, 32
  %v271 = vpop.permute.xlu0 %270
  %272 = vrot.lane.b32.xlu0 %v267, 32
  %v273 = vpop.permute.xlu0 %272
  %v276 = vadd.f32 %v256, %v271
  %v277 = vadd.f32 %v257, %v273
  %v278 = vtanh.pop %v276
  %v279 = vtanh.pop %v277
  %282 = vrot.lane.b32.xlu0 %v278, 32
  %v283 = vpop.permute.xlu0 %282
  %284 = vrot.lane.b32.xlu0 %v279, 32
  %v285 = vpop.permute.xlu0 %284
  %v288 = vmul.f32 %v232, %v283
  %v289 = vmul.f32 %v247, %v285
  %v292 = vrot.slane %v288, 1
  %v293 = vsel %vm178, %v289, %v292
  %294 = vrot.lane.b32.xlu0 %v293, 64
  %v295 = vpop.permute.xlu0 %294
  %v296 = vsel %vm71, %v295, 0
  %298 = vmatpush.msra.mxu0 0.0
  %299 = vmatpush.msra.mxu0 0.0
  %300 = vmatpush.msra.mxu0 0.0
  %301 = vmatpush.msra.mxu0 0.0
  %302 = vmatpush.msra.mxu0 0.0
  %303 = vmatpush.msra.mxu0 0.0
  %304 = vmatpush.msra.mxu0 0.0
  %305 = vmatpush.msra.mxu0 0.0
  %306 = vmatpush.msra.mxu0 0.0
  %307 = vmatpush.msra.mxu0 0.0
  %308 = vmatpush.msra.mxu0 0.0
  %309 = vmatpush.msra.mxu0 0.0
  %310 = vmatpush.msra.mxu0 %v70
  %311 = vmatpush.msra.mxu0 %v69
  %312 = vmatpush.msra.mxu0 %v68
  %313 = vmatpush.msra.mxu0 %v67
  %314 = vmatmul.f32.gmra.mxu0 %v296
  %v315 = vpop.f32.mrf.mxu0
  %v316 = vadd.f32 0.0, %v315
  %317 = vdwg.mxu0
  %v319 = vrot.slane %v316, 6
  %v320 = vrot.slane %v316, 7
  %v323 = vadd.f32 %v62, %v319
  %v324 = vadd.f32 %v65, %v320
  %v325 = vxor.u32 %v323, 2147483648
  %v326 = vxor.u32 %v324, 2147483648
  %v327 = vmul.f32 %v325, 1.442695
  %v328 = vpow.pop %v327
  %v329 = vmul.f32 %v326, 1.442695
  %v330 = vpow.pop %v329
  %v331 = vadd.f32 %v328, 1.0
  %v332 = vadd.f32 %v330, 1.0
  %v333 = vrcp.pop %v331
  %v334 = vmul.f32 %v331, %v333
  %v335 = vsub.f32 1.0, %v334
  %v336 = vmul.f32 %v333, %v335
  %v337 = vadd.f32 %v333, %v336
  %vm338 = vweird.f32 %v331
  %vm339 = vweird.f32 %v333
  %vm340 = vmor %vm338, %vm339
  %v341 = vsel %vm340, %v333, %v337
  %v342 = vand.u32 2147483647, %v331
  %vm343 = vcmp.eq.f32.partialorder %v342, 8.507059e+37
  %v344 = vand.u32 %v331, 2147483648
  %v345 = vor.u32 1.1754944e-38, %v344
  %v346 = vsel %vm343, %v345, %v341
  %v347 = vmul.f32 1.0, %v346
  %v348 = vrcp.pop %v332
  %v349 = vmul.f32 %v332, %v348
  %v350 = vsub.f32 1.0, %v349
  %v351 = vmul.f32 %v348, %v350
  %v352 = vadd.f32 %v348, %v351
  %vm353 = vweird.f32 %v332
  %vm354 = vweird.f32 %v348
  %vm355 = vmor %vm353, %vm354
  %v356 = vsel %vm355, %v348, %v352
  %v357 = vand.u32 2147483647, %v332
  %vm358 = vcmp.eq.f32.partialorder %v357, 8.507059e+37
  %v359 = vand.u32 %v332, 2147483648
  %v360 = vor.u32 1.1754944e-38, %v359
  %v361 = vsel %vm358, %v360, %v356
  %v362 = vmul.f32 1.0, %v361
  %v363 = vtanh.pop %v323
  %v364 = vtanh.pop %v324
  %v367 = vrot.slane %v276, 7
  %v368 = vrot.slane %v277, 7
  %v371 = vmul.f32 %v347, %v367
  %v372 = vmul.f32 %v362, %v368
  %375 = vrot.lane.b32.xlu0 %v363, 32
  %v376 = vpop.permute.xlu0 %375
  %377 = vrot.lane.b32.xlu0 %v364, 32
  %v378 = vpop.permute.xlu0 %377
  %v381 = vmul.f32 %v347, %v376
  %v382 = vmul.f32 %v362, %v378
  %385 = vrot.lane.b32.xlu0 %v381, 32
  %v386 = vpop.permute.xlu0 %385
  %387 = vrot.lane.b32.xlu0 %v382, 32
  %v388 = vpop.permute.xlu0 %387
  %v391 = vadd.f32 %v371, %v386
  %v392 = vadd.f32 %v372, %v388
  %v393 = vtanh.pop %v391
  %v394 = vtanh.pop %v392
  %397 = vrot.lane.b32.xlu0 %v393, 32
  %v398 = vpop.permute.xlu0 %397
  %399 = vrot.lane.b32.xlu0 %v394, 32
  %v400 = vpop.permute.xlu0 %399
  %v403 = vmul.f32 %v347, %v398
  %v404 = vmul.f32 %v362, %v400
  %v407 = vrot.slane %v403, 2
  %v408 = vrot.slane %v404, 1
  %v409 = vsel %vm178, %v408, %v407
  %410 = vrot.lane.b32.xlu0 %v409, 64
  %v411 = vpop.permute.xlu0 %410
  %v412 = vsel %vm71, %v411, 0
  %414 = vmatpush.msra.mxu0 0.0
  %415 = vmatpush.msra.mxu0 0.0
  %416 = vmatpush.msra.mxu0 0.0
  %417 = vmatpush.msra.mxu0 0.0
  %418 = vmatpush.msra.mxu0 0.0
  %419 = vmatpush.msra.mxu0 0.0
  %420 = vmatpush.msra.mxu0 0.0
  %421 = vmatpush.msra.mxu0 0.0
  %422 = vmatpush.msra.mxu0 0.0
  %423 = vmatpush.msra.mxu0 0.0
  %424 = vmatpush.msra.mxu0 0.0
  %425 = vmatpush.msra.mxu0 0.0
  %426 = vmatpush.msra.mxu0 %v70
  %427 = vmatpush.msra.mxu0 %v69
  %428 = vmatpush.msra.mxu0 %v68
  %429 = vmatpush.msra.mxu0 %v67
  %430 = vmatmul.f32.gmra.mxu0 %v412
  %v431 = vpop.f32.mrf.mxu0
  %v432 = vadd.f32 0.0, %v431
  %433 = vdwg.mxu0
  %v435 = vrot.slane %v432, 5
  %v436 = vrot.slane %v432, 6
  %v439 = vadd.f32 %v62, %v435
  %v440 = vadd.f32 %v65, %v436
  %v441 = vxor.u32 %v439, 2147483648
  %v442 = vxor.u32 %v440, 2147483648
  %v443 = vmul.f32 %v441, 1.442695
  %v444 = vpow.pop %v443
  %v445 = vmul.f32 %v442, 1.442695
  %v446 = vpow.pop %v445
  %v447 = vadd.f32 %v444, 1.0
  %v448 = vadd.f32 %v446, 1.0
  %v449 = vrcp.pop %v447
  %v450 = vmul.f32 %v447, %v449
  %v451 = vsub.f32 1.0, %v450
  %v452 = vmul.f32 %v449, %v451
  %v453 = vadd.f32 %v449, %v452
  %vm454 = vweird.f32 %v447
  %vm455 = vweird.f32 %v449
  %vm456 = vmor %vm454, %vm455
  %v457 = vsel %vm456, %v449, %v453
  %v458 = vand.u32 2147483647, %v447
  %vm459 = vcmp.eq.f32.partialorder %v458, 8.507059e+37
  %v460 = vand.u32 %v447, 2147483648
  %v461 = vor.u32 1.1754944e-38, %v460
  %v462 = vsel %vm459, %v461, %v457
  %v463 = vmul.f32 1.0, %v462
  %v464 = vrcp.pop %v448
  %v465 = vmul.f32 %v448, %v464
  %v466 = vsub.f32 1.0, %v465
  %v467 = vmul.f32 %v464, %v466
  %v468 = vadd.f32 %v464, %v467
  %vm469 = vweird.f32 %v448
  %vm470 = vweird.f32 %v464
  %vm471 = vmor %vm469, %vm470
  %v472 = vsel %vm471, %v464, %v468
  %v473 = vand.u32 2147483647, %v448
  %vm474 = vcmp.eq.f32.partialorder %v473, 8.507059e+37
  %v475 = vand.u32 %v448, 2147483648
  %v476 = vor.u32 1.1754944e-38, %v475
  %v477 = vsel %vm474, %v476, %v472
  %v478 = vmul.f32 1.0, %v477
  %v479 = vtanh.pop %v439
  %v480 = vtanh.pop %v440
  %v483 = vrot.slane %v391, 7
  %v484 = vrot.slane %v392, 7
  %v487 = vmul.f32 %v463, %v483
  %v488 = vmul.f32 %v478, %v484
  %491 = vrot.lane.b32.xlu0 %v479, 32
  %v492 = vpop.permute.xlu0 %491
  %493 = vrot.lane.b32.xlu0 %v480, 32
  %v494 = vpop.permute.xlu0 %493
  %v497 = vmul.f32 %v463, %v492
  %v498 = vmul.f32 %v478, %v494
  %501 = vrot.lane.b32.xlu0 %v497, 32
  %v502 = vpop.permute.xlu0 %501
  %503 = vrot.lane.b32.xlu0 %v498, 32
  %v504 = vpop.permute.xlu0 %503
  %v507 = vadd.f32 %v487, %v502
  %v508 = vadd.f32 %v488, %v504
  %v509 = vtanh.pop %v507
  %v510 = vtanh.pop %v508
  %513 = vrot.lane.b32.xlu0 %v509, 32
  %v514 = vpop.permute.xlu0 %513
  %515 = vrot.lane.b32.xlu0 %v510, 32
  %v516 = vpop.permute.xlu0 %515
  %v519 = vmul.f32 %v463, %v514
  %v520 = vmul.f32 %v478, %v516
  %v523 = vrot.slane %v519, 3
  %v524 = vrot.slane %v520, 2
  %v525 = vsel %vm178, %v524, %v523
  %526 = vrot.lane.b32.xlu0 %v525, 64
  %v527 = vpop.permute.xlu0 %526
  %v528 = vsel %vm71, %v527, 0
  %530 = vmatpush.msra.mxu0 0.0
  %531 = vmatpush.msra.mxu0 0.0
  %532 = vmatpush.msra.mxu0 0.0
  %533 = vmatpush.msra.mxu0 0.0
  %534 = vmatpush.msra.mxu0 0.0
  %535 = vmatpush.msra.mxu0 0.0
  %536 = vmatpush.msra.mxu0 0.0
  %537 = vmatpush.msra.mxu0 0.0
  %538 = vmatpush.msra.mxu0 0.0
  %539 = vmatpush.msra.mxu0 0.0
  %540 = vmatpush.msra.mxu0 0.0
  %541 = vmatpush.msra.mxu0 0.0
  %542 = vmatpush.msra.mxu0 %v70
  %543 = vmatpush.msra.mxu0 %v69
  %544 = vmatpush.msra.mxu0 %v68
  %545 = vmatpush.msra.mxu0 %v67
  %546 = vmatmul.f32.gmra.mxu0 %v528
  %v547 = vpop.f32.mrf.mxu0
  %v548 = vadd.f32 0.0, %v547
  %549 = vdwg.mxu0
  %v551 = vrot.slane %v548, 4
  %v552 = vrot.slane %v548, 5
  %v555 = vadd.f32 %v62, %v551
  %v556 = vadd.f32 %v65, %v552
  %v557 = vxor.u32 %v555, 2147483648
  %v558 = vxor.u32 %v556, 2147483648
  %v559 = vmul.f32 %v557, 1.442695
  %v560 = vpow.pop %v559
  %v561 = vmul.f32 %v558, 1.442695
  %v562 = vpow.pop %v561
  %v563 = vadd.f32 %v560, 1.0
  %v564 = vadd.f32 %v562, 1.0
  %v565 = vrcp.pop %v563
  %v566 = vmul.f32 %v563, %v565
  %v567 = vsub.f32 1.0, %v566
  %v568 = vmul.f32 %v565, %v567
  %v569 = vadd.f32 %v565, %v568
  %vm570 = vweird.f32 %v563
  %vm571 = vweird.f32 %v565
  %vm572 = vmor %vm570, %vm571
  %v573 = vsel %vm572, %v565, %v569
  %v574 = vand.u32 2147483647, %v563
  %vm575 = vcmp.eq.f32.partialorder %v574, 8.507059e+37
  %v576 = vand.u32 %v563, 2147483648
  %v577 = vor.u32 1.1754944e-38, %v576
  %v578 = vsel %vm575, %v577, %v573
  %v579 = vmul.f32 1.0, %v578
  %v580 = vrcp.pop %v564
  %v581 = vmul.f32 %v564, %v580
  %v582 = vsub.f32 1.0, %v581
  %v583 = vmul.f32 %v580, %v582
  %v584 = vadd.f32 %v580, %v583
  %vm585 = vweird.f32 %v564
  %vm586 = vweird.f32 %v580
  %vm587 = vmor %vm585, %vm586
  %v588 = vsel %vm587, %v580, %v584
  %v589 = vand.u32 2147483647, %v564
  %vm590 = vcmp.eq.f32.partialorder %v589, 8.507059e+37
  %v591 = vand.u32 %v564, 2147483648
  %v592 = vor.u32 1.1754944e-38, %v591
  %v593 = vsel %vm590, %v592, %v588
  %v594 = vmul.f32 1.0, %v593
  %v595 = vtanh.pop %v555
  %v596 = vtanh.pop %v556
  %v599 = vrot.slane %v507, 7
  %v600 = vrot.slane %v508, 7
  %v603 = vmul.f32 %v579, %v599
  %v604 = vmul.f32 %v594, %v600
  %607 = vrot.lane.b32.xlu0 %v595, 32
  %v608 = vpop.permute.xlu0 %607
  %609 = vrot.lane.b32.xlu0 %v596, 32
  %v610 = vpop.permute.xlu0 %609
  %v613 = vmul.f32 %v579, %v608
  %v614 = vmul.f32 %v594, %v610
  %617 = vrot.lane.b32.xlu0 %v613, 32
  %v618 = vpop.permute.xlu0 %617
  %619 = vrot.lane.b32.xlu0 %v614, 32
  %v620 = vpop.permute.xlu0 %619
  %v623 = vadd.f32 %v603, %v618
  %v624 = vadd.f32 %v604, %v620
  %v625 = vtanh.pop %v623
  %v626 = vtanh.pop %v624
  %629 = vrot.lane.b32.xlu0 %v625, 32
  %v630 = vpop.permute.xlu0 %629
  %631 = vrot.lane.b32.xlu0 %v626, 32
  %v632 = vpop.permute.xlu0 %631
  %v635 = vmul.f32 %v579, %v630
  %v636 = vmul.f32 %v594, %v632
  %v639 = vrot.slane %v635, 4
  %v640 = vrot.slane %v636, 3
  %v641 = vsel %vm178, %v640, %v639
  %642 = vrot.lane.b32.xlu0 %v641, 64
  %v643 = vpop.permute.xlu0 %642
  %v644 = vsel %vm71, %v643, 0
  %646 = vmatpush.msra.mxu0 0.0
  %647 = vmatpush.msra.mxu0 0.0
  %648 = vmatpush.msra.mxu0 0.0
  %649 = vmatpush.msra.mxu0 0.0
  %650 = vmatpush.msra.mxu0 0.0
  %651 = vmatpush.msra.mxu0 0.0
  %652 = vmatpush.msra.mxu0 0.0
  %653 = vmatpush.msra.mxu0 0.0
  %654 = vmatpush.msra.mxu0 0.0
  %655 = vmatpush.msra.mxu0 0.0
  %656 = vmatpush.msra.mxu0 0.0
  %657 = vmatpush.msra.mxu0 0.0
  %658 = vmatpush.msra.mxu0 %v70
  %659 = vmatpush.msra.mxu0 %v69
  %660 = vmatpush.msra.mxu0 %v68
  %661 = vmatpush.msra.mxu0 %v67
  %662 = vmatmul.f32.gmra.mxu0 %v644
  %v663 = vpop.f32.mrf.mxu0
  %v664 = vadd.f32 0.0, %v663
  %665 = vdwg.mxu0
  %v667 = vrot.slane %v664, 3
  %v668 = vrot.slane %v664, 4
  %v671 = vadd.f32 %v62, %v667
  %v672 = vadd.f32 %v65, %v668
  %v673 = vxor.u32 %v671, 2147483648
  %v674 = vxor.u32 %v672, 2147483648
  %v675 = vmul.f32 %v673, 1.442695
  %v676 = vpow.pop %v675
  %v677 = vmul.f32 %v674, 1.442695
  %v678 = vpow.pop %v677
  %v679 = vadd.f32 %v676, 1.0
  %v680 = vadd.f32 %v678, 1.0
  %v681 = vrcp.pop %v679
  %v682 = vmul.f32 %v679, %v681
  %v683 = vsub.f32 1.0, %v682
  %v684 = vmul.f32 %v681, %v683
  %v685 = vadd.f32 %v681, %v684
  %vm686 = vweird.f32 %v679
  %vm687 = vweird.f32 %v681
  %vm688 = vmor %vm686, %vm687
  %v689 = vsel %vm688, %v681, %v685
  %v690 = vand.u32 2147483647, %v679
  %vm691 = vcmp.eq.f32.partialorder %v690, 8.507059e+37
  %v692 = vand.u32 %v679, 2147483648
  %v693 = vor.u32 1.1754944e-38, %v692
  %v694 = vsel %vm691, %v693, %v689
  %v695 = vmul.f32 1.0, %v694
  %v696 = vrcp.pop %v680
  %v697 = vmul.f32 %v680, %v696
  %v698 = vsub.f32 1.0, %v697
  %v699 = vmul.f32 %v696, %v698
  %v700 = vadd.f32 %v696, %v699
  %vm701 = vweird.f32 %v680
  %vm702 = vweird.f32 %v696
  %vm703 = vmor %vm701, %vm702
  %v704 = vsel %vm703, %v696, %v700
  %v705 = vand.u32 2147483647, %v680
  %vm706 = vcmp.eq.f32.partialorder %v705, 8.507059e+37
  %v707 = vand.u32 %v680, 2147483648
  %v708 = vor.u32 1.1754944e-38, %v707
  %v709 = vsel %vm706, %v708, %v704
  %v710 = vmul.f32 1.0, %v709
  %v711 = vtanh.pop %v671
  %v712 = vtanh.pop %v672
  %v715 = vrot.slane %v623, 7
  %v716 = vrot.slane %v624, 7
  %v719 = vmul.f32 %v695, %v715
  %v720 = vmul.f32 %v710, %v716
  %723 = vrot.lane.b32.xlu0 %v711, 32
  %v724 = vpop.permute.xlu0 %723
  %725 = vrot.lane.b32.xlu0 %v712, 32
  %v726 = vpop.permute.xlu0 %725
  %v729 = vmul.f32 %v695, %v724
  %v730 = vmul.f32 %v710, %v726
  %733 = vrot.lane.b32.xlu0 %v729, 32
  %v734 = vpop.permute.xlu0 %733
  %735 = vrot.lane.b32.xlu0 %v730, 32
  %v736 = vpop.permute.xlu0 %735
  %v739 = vadd.f32 %v719, %v734
  %v740 = vadd.f32 %v720, %v736
  %v741 = vtanh.pop %v739
  %v742 = vtanh.pop %v740
  %745 = vrot.lane.b32.xlu0 %v741, 32
  %v746 = vpop.permute.xlu0 %745
  %747 = vrot.lane.b32.xlu0 %v742, 32
  %v748 = vpop.permute.xlu0 %747
  %v751 = vmul.f32 %v695, %v746
  %v752 = vmul.f32 %v710, %v748
  %v755 = vrot.slane %v751, 5
  %v756 = vrot.slane %v752, 4
  %v757 = vsel %vm178, %v756, %v755
  %758 = vrot.lane.b32.xlu0 %v757, 64
  %v759 = vpop.permute.xlu0 %758
  %v760 = vsel %vm71, %v759, 0
  %762 = vmatpush.msra.mxu0 0.0
  %763 = vmatpush.msra.mxu0 0.0
  %764 = vmatpush.msra.mxu0 0.0
  %765 = vmatpush.msra.mxu0 0.0
  %766 = vmatpush.msra.mxu0 0.0
  %767 = vmatpush.msra.mxu0 0.0
  %768 = vmatpush.msra.mxu0 0.0
  %769 = vmatpush.msra.mxu0 0.0
  %770 = vmatpush.msra.mxu0 0.0
  %771 = vmatpush.msra.mxu0 0.0
  %772 = vmatpush.msra.mxu0 0.0
  %773 = vmatpush.msra.mxu0 0.0
  %774 = vmatpush.msra.mxu0 %v70
  %775 = vmatpush.msra.mxu0 %v69
  %776 = vmatpush.msra.mxu0 %v68
  %777 = vmatpush.msra.mxu0 %v67
  %778 = vmatmul.f32.gmra.mxu0 %v760
  %v779 = vpop.f32.mrf.mxu0
  %v780 = vadd.f32 0.0, %v779
  %781 = vdwg.mxu0
  %v783 = vrot.slane %v780, 2
  %v784 = vrot.slane %v780, 3
  %v787 = vadd.f32 %v62, %v783
  %v788 = vadd.f32 %v65, %v784
  %v789 = vxor.u32 %v787, 2147483648
  %v790 = vxor.u32 %v788, 2147483648
  %v791 = vmul.f32 %v789, 1.442695
  %v792 = vpow.pop %v791
  %v793 = vmul.f32 %v790, 1.442695
  %v794 = vpow.pop %v793
  %v795 = vadd.f32 %v792, 1.0
  %v796 = vadd.f32 %v794, 1.0
  %v797 = vrcp.pop %v795
  %v798 = vmul.f32 %v795, %v797
  %v799 = vsub.f32 1.0, %v798
  %v800 = vmul.f32 %v797, %v799
  %v801 = vadd.f32 %v797, %v800
  %vm802 = vweird.f32 %v795
  %vm803 = vweird.f32 %v797
  %vm804 = vmor %vm802, %vm803
  %v805 = vsel %vm804, %v797, %v801
  %v806 = vand.u32 2147483647, %v795
  %vm807 = vcmp.eq.f32.partialorder %v806, 8.507059e+37
  %v808 = vand.u32 %v795, 2147483648
  %v809 = vor.u32 1.1754944e-38, %v808
  %v810 = vsel %vm807, %v809, %v805
  %v811 = vmul.f32 1.0, %v810
  %v812 = vrcp.pop %v796
  %v813 = vmul.f32 %v796, %v812
  %v814 = vsub.f32 1.0, %v813
  %v815 = vmul.f32 %v812, %v814
  %v816 = vadd.f32 %v812, %v815
  %vm817 = vweird.f32 %v796
  %vm818 = vweird.f32 %v812
  %vm819 = vmor %vm817, %vm818
  %v820 = vsel %vm819, %v812, %v816
  %v821 = vand.u32 2147483647, %v796
  %vm822 = vcmp.eq.f32.partialorder %v821, 8.507059e+37
  %v823 = vand.u32 %v796, 2147483648
  %v824 = vor.u32 1.1754944e-38, %v823
  %v825 = vsel %vm822, %v824, %v820
  %v826 = vmul.f32 1.0, %v825
  %v827 = vtanh.pop %v787
  %v828 = vtanh.pop %v788
  %v831 = vrot.slane %v739, 7
  %v832 = vrot.slane %v740, 7
  %v835 = vmul.f32 %v811, %v831
  %v836 = vmul.f32 %v826, %v832
  %839 = vrot.lane.b32.xlu0 %v827, 32
  %v840 = vpop.permute.xlu0 %839
  %841 = vrot.lane.b32.xlu0 %v828, 32
  %v842 = vpop.permute.xlu0 %841
  %v845 = vmul.f32 %v811, %v840
  %v846 = vmul.f32 %v826, %v842
  %849 = vrot.lane.b32.xlu0 %v845, 32
  %v850 = vpop.permute.xlu0 %849
  %851 = vrot.lane.b32.xlu0 %v846, 32
  %v852 = vpop.permute.xlu0 %851
  %v855 = vadd.f32 %v835, %v850
  %v856 = vadd.f32 %v836, %v852
  %v857 = vtanh.pop %v855
  %v858 = vtanh.pop %v856
  %861 = vrot.lane.b32.xlu0 %v857, 32
  %v862 = vpop.permute.xlu0 %861
  %863 = vrot.lane.b32.xlu0 %v858, 32
  %v864 = vpop.permute.xlu0 %863
  %v867 = vmul.f32 %v811, %v862
  %v868 = vmul.f32 %v826, %v864
  %v871 = vrot.slane %v867, 6
  %v872 = vrot.slane %v868, 5
  %v873 = vsel %vm178, %v872, %v871
  %874 = vrot.lane.b32.xlu0 %v873, 64
  %v875 = vpop.permute.xlu0 %874
  %v876 = vsel %vm71, %v875, 0
  %878 = vmatpush.msra.mxu0 0.0
  %879 = vmatpush.msra.mxu0 0.0
  %880 = vmatpush.msra.mxu0 0.0
  %881 = vmatpush.msra.mxu0 0.0
  %882 = vmatpush.msra.mxu0 0.0
  %883 = vmatpush.msra.mxu0 0.0
  %884 = vmatpush.msra.mxu0 0.0
  %885 = vmatpush.msra.mxu0 0.0
  %886 = vmatpush.msra.mxu0 0.0
  %887 = vmatpush.msra.mxu0 0.0
  %888 = vmatpush.msra.mxu0 0.0
  %889 = vmatpush.msra.mxu0 0.0
  %890 = vmatpush.msra.mxu0 %v70
  %891 = vmatpush.msra.mxu0 %v69
  %892 = vmatpush.msra.mxu0 %v68
  %893 = vmatpush.msra.mxu0 %v67
  %894 = vmatmul.f32.gmra.mxu0 %v876
  %v895 = vpop.f32.mrf.mxu0
  %v896 = vadd.f32 0.0, %v895
  %897 = vdwg.mxu0
  %v899 = vrot.slane %v896, 1
  %v900 = vrot.slane %v896, 2
  %v903 = vadd.f32 %v62, %v899
  %v904 = vadd.f32 %v65, %v900
  %v905 = vxor.u32 %v903, 2147483648
  %v906 = vxor.u32 %v904, 2147483648
  %v907 = vmul.f32 %v905, 1.442695
  %v908 = vpow.pop %v907
  %v909 = vmul.f32 %v906, 1.442695
  %v910 = vpow.pop %v909
  %v911 = vadd.f32 %v908, 1.0
  %v912 = vadd.f32 %v910, 1.0
  %v913 = vrcp.pop %v911
  %v914 = vmul.f32 %v911, %v913
  %v915 = vsub.f32 1.0, %v914
  %v916 = vmul.f32 %v913, %v915
  %v917 = vadd.f32 %v913, %v916
  %vm918 = vweird.f32 %v911
  %vm919 = vweird.f32 %v913
  %vm920 = vmor %vm918, %vm919
  %v921 = vsel %vm920, %v913, %v917
  %v922 = vand.u32 2147483647, %v911
  %vm923 = vcmp.eq.f32.partialorder %v922, 8.507059e+37
  %v924 = vand.u32 %v911, 2147483648
  %v925 = vor.u32 1.1754944e-38, %v924
  %v926 = vsel %vm923, %v925, %v921
  %v927 = vmul.f32 1.0, %v926
  %v928 = vrcp.pop %v912
  %v929 = vmul.f32 %v912, %v928
  %v930 = vsub.f32 1.0, %v929
  %v931 = vmul.f32 %v928, %v930
  %v932 = vadd.f32 %v928, %v931
  %vm933 = vweird.f32 %v912
  %vm934 = vweird.f32 %v928
  %vm935 = vmor %vm933, %vm934
  %v936 = vsel %vm935, %v928, %v932
  %v937 = vand.u32 2147483647, %v912
  %vm938 = vcmp.eq.f32.partialorder %v937, 8.507059e+37
  %v939 = vand.u32 %v912, 2147483648
  %v940 = vor.u32 1.1754944e-38, %v939
  %v941 = vsel %vm938, %v940, %v936
  %v942 = vmul.f32 1.0, %v941
  %v943 = vtanh.pop %v903
  %v944 = vtanh.pop %v904
  %v947 = vrot.slane %v855, 7
  %v948 = vrot.slane %v856, 7
  %v951 = vmul.f32 %v927, %v947
  %v952 = vmul.f32 %v942, %v948
  %955 = vrot.lane.b32.xlu0 %v943, 32
  %v956 = vpop.permute.xlu0 %955
  %957 = vrot.lane.b32.xlu0 %v944, 32
  %v958 = vpop.permute.xlu0 %957
  %v961 = vmul.f32 %v927, %v956
  %v962 = vmul.f32 %v942, %v958
  %965 = vrot.lane.b32.xlu0 %v961, 32
  %v966 = vpop.permute.xlu0 %965
  %967 = vrot.lane.b32.xlu0 %v962, 32
  %v968 = vpop.permute.xlu0 %967
  %v971 = vadd.f32 %v951, %v966
  %v972 = vadd.f32 %v952, %v968
  %v973 = vtanh.pop %v971
  %v974 = vtanh.pop %v972
  %977 = vrot.lane.b32.xlu0 %v973, 32
  %v978 = vpop.permute.xlu0 %977
  %979 = vrot.lane.b32.xlu0 %v974, 32
  %v980 = vpop.permute.xlu0 %979
  %v983 = vmul.f32 %v927, %v978
  %v984 = vmul.f32 %v942, %v980
  %v985 = vld [vmem:[%s4] sm:$0xff]
  %v986 = vld [vmem:[%s4 + $0x8] sm:$0xff]
  %v987 = vld [vmem:[%s4 + $0x10] sm:$0xff]
  %v988 = vld [vmem:[%s4 + $0x18] sm:$0xff]
  %v989 = vld [vmem:[%s6] sm:$0x1]
  %v991 = vperm.slane %v989, 0
  %v995 = vrot.slane %v983, 7
  %v996 = vrot.slane %v984, 6
  %v997 = vsel %vm178, %v996, %v995
  %998 = vrot.lane.b32.xlu0 %v997, 64
  %v999 = vpop.permute.xlu0 %998
  %v1000 = vsel %vm71, %v999, 0
  %1002 = vmatpush.msra.mxu0 0.0
  %1003 = vmatpush.msra.mxu0 0.0
  %1004 = vmatpush.msra.mxu0 0.0
  %1005 = vmatpush.msra.mxu0 0.0
  %1006 = vmatpush.msra.mxu0 0.0
  %1007 = vmatpush.msra.mxu0 0.0
  %1008 = vmatpush.msra.mxu0 0.0
  %1009 = vmatpush.msra.mxu0 0.0
  %1010 = vmatpush.msra.mxu0 0.0
  %1011 = vmatpush.msra.mxu0 0.0
  %1012 = vmatpush.msra.mxu0 0.0
  %1013 = vmatpush.msra.mxu0 0.0
  %1014 = vmatpush.msra.mxu0 %v988
  %1015 = vmatpush.msra.mxu0 %v987
  %1016 = vmatpush.msra.mxu0 %v986
  %1017 = vmatpush.msra.mxu0 %v985
  %1018 = vmatmul.f32.gmra.mxu0 %v1000
  %v1019 = vpop.f32.mrf.mxu0
  %v1020 = vadd.f32 %v991, %v1019
  %1021 = vdwg.mxu0
  %v1022 = vld [vmem:[%s5] sm:$0xf]
  %v1023 = vperm.slane %v1022, 0
  %v1024 = vmul.f32 %v1023, 0.0
  %v1025 = vadd.f32 %v1020, %v1024
  %v1026 = vperm.slane %v1022, 1
  %v1027 = vmul.f32 %v1026, 0.0
  %v1028 = vadd.f32 %v1025, %v1027
  %v1029 = vperm.slane %v1022, 2
  %v1030 = vmul.f32 %v1029, 0.0
  %v1031 = vadd.f32 %v1028, %v1030
  %v1032 = vperm.slane %v1022, 3
  %v1033 = vmul.f32 %v1032, 0.0
  %v1034 = vadd.f32 %v1031, %v1033
  %v1035 = vxor.u32 %v1034, 2147483648
  %v1036 = vmul.f32 %v1035, 1.442695
  %v1037 = vpow.pop %v1036
  %v1038 = vadd.f32 %v1037, 1.0
  %v1039 = vrcp.pop %v1038
  %v1040 = vmul.f32 %v1038, %v1039
  %v1041 = vsub.f32 1.0, %v1040
  %v1042 = vmul.f32 %v1039, %v1041
  %v1043 = vadd.f32 %v1039, %v1042
  %vm1044 = vweird.f32 %v1038
  %vm1045 = vweird.f32 %v1039
  %vm1046 = vmor %vm1044, %vm1045
  %v1047 = vsel %vm1046, %v1039, %v1043
  %v1048 = vand.u32 2147483647, %v1038
  %vm1049 = vcmp.eq.f32.partialorder %v1048, 8.507059e+37
  %v1050 = vand.u32 %v1038, 2147483648
  %v1051 = vor.u32 1.1754944e-38, %v1050
  %v1052 = vsel %vm1049, %v1051, %v1047
  %v1053 = vmul.f32 1.0, %v1052
  %v1054 = vtanh.pop %v1034
  %v1055 = vmul.f32 %v1053, 0.0
  %1057 = vrot.lane.b32.xlu0 %v1054, 116
  %v1058 = vpop.permute.xlu0 %1057
  %v1060 = vmul.f32 %v1053, %v1058
  %1062 = vrot.lane.b32.xlu0 %v1060, 4
  %v1063 = vpop.permute.xlu0 %1062
  %v1065 = vadd.f32 %v1055, %v1063
  %v1066 = vtanh.pop %v1065
  %1068 = vrot.lane.b32.xlu0 %v1066, 4
  %v1069 = vpop.permute.xlu0 %1068
  %v1071 = vmul.f32 %v1053, %v1069
  %1073 = vset.pattern.permute.xlu0 8
  %1074 = vperm.xlu0 %1073, %v1071
  %v1075 = vpop.permute.xlu0 %1074
  %v1077 = vmul.f32 %v1075, %v1023
  %v1078 = vadd.f32 %v1020, %v1077
  %1079 = vset.pattern.permute.xlu0 9
  %1080 = vperm.xlu0 %1079, %v1071
  %v1081 = vpop.permute.xlu0 %1080
  %v1083 = vmul.f32 %v1081, %v1026
  %v1084 = vadd.f32 %v1078, %v1083
  %1085 = vset.pattern.permute.xlu0 10
  %1086 = vperm.xlu0 %1085, %v1071
  %v1087 = vpop.permute.xlu0 %1086
  %v1089 = vmul.f32 %v1087, %v1029
  %v1090 = vadd.f32 %v1084, %v1089
  %1091 = vset.pattern.permute.xlu0 11
  %1092 = vperm.xlu0 %1091, %v1071
  %v1093 = vpop.permute.xlu0 %1092
  %v1095 = vmul.f32 %v1093, %v1032
  %v1096 = vadd.f32 %v1090, %v1095
  %v1097 = vxor.u32 %v1096, 2147483648
  %v1098 = vmul.f32 %v1097, 1.442695
  %v1099 = vpow.pop %v1098
  %v1100 = vadd.f32 %v1099, 1.0
  %v1101 = vrcp.pop %v1100
  %v1102 = vmul.f32 %v1100, %v1101
  %v1103 = vsub.f32 1.0, %v1102
  %v1104 = vmul.f32 %v1101, %v1103
  %v1105 = vadd.f32 %v1101, %v1104
  %vm1106 = vweird.f32 %v1100
  %vm1107 = vweird.f32 %v1101
  %vm1108 = vmor %vm1106, %vm1107
  %v1109 = vsel %vm1108, %v1101, %v1105
  %v1110 = vand.u32 2147483647, %v1100
  %vm1111 = vcmp.eq.f32.partialorder %v1110, 8.507059e+37
  %v1112 = vand.u32 %v1100, 2147483648
  %v1113 = vor.u32 1.1754944e-38, %v1112
  %v1114 = vsel %vm1111, %v1113, %v1109
  %v1115 = vmul.f32 1.0, %v1114
  %v1116 = vtanh.pop %v1096
  %v1117 = vmul.f32 %v1115, %v1065
  %1119 = vrot.lane.b32.xlu0 %v1116, 116
  %v1120 = vpop.permute.xlu0 %1119
  %v1122 = vmul.f32 %v1115, %v1120
  %1124 = vrot.lane.b32.xlu0 %v1122, 4
  %v1125 = vpop.permute.xlu0 %1124
  %v1127 = vadd.f32 %v1117, %v1125
  %v1128 = vtanh.pop %v1127
  %1130 = vrot.lane.b32.xlu0 %v1128, 4
  %v1131 = vpop.permute.xlu0 %1130
  %v1133 = vmul.f32 %v1115, %v1131
  %1135 = vset.pattern.permute.xlu0 8
  %1136 = vperm.xlu0 %1135, %v1133
  %v1137 = vpop.permute.xlu0 %1136
  %v1139 = vmul.f32 %v1137, %v1023
  %v1140 = vadd.f32 %v1020, %v1139
  %1141 = vset.pattern.permute.xlu0 9
  %1142 = vperm.xlu0 %1141, %v1133
  %v1143 = vpop.permute.xlu0 %1142
  %v1145 = vmul.f32 %v1143, %v1026
  %v1146 = vadd.f32 %v1140, %v1145
  %1147 = vset.pattern.permute.xlu0 10
  %1148 = vperm.xlu0 %1147, %v1133
  %v1149 = vpop.permute.xlu0 %1148
  %v1151 = vmul.f32 %v1149, %v1029
  %v1152 = vadd.f32 %v1146, %v1151
  %1153 = vset.pattern.permute.xlu0 11
  %1154 = vperm.xlu0 %1153, %v1133
  %v1155 = vpop.permute.xlu0 %1154
  %v1157 = vmul.f32 %v1155, %v1032
  %v1158 = vadd.f32 %v1152, %v1157
  %v1159 = vxor.u32 %v1158, 2147483648
  %v1160 = vmul.f32 %v1159, 1.442695
  %v1161 = vpow.pop %v1160
  %v1162 = vadd.f32 %v1161, 1.0
  %v1163 = vrcp.pop %v1162
  %v1164 = vmul.f32 %v1162, %v1163
  %v1165 = vsub.f32 1.0, %v1164
  %v1166 = vmul.f32 %v1163, %v1165
  %v1167 = vadd.f32 %v1163, %v1166
  %vm1168 = vweird.f32 %v1162
  %vm1169 = vweird.f32 %v1163
  %vm1170 = vmor %vm1168, %vm1169
  %v1171 = vsel %vm1170, %v1163, %v1167
  %v1172 = vand.u32 2147483647, %v1162
  %vm1173 = vcmp.eq.f32.partialorder %v1172, 8.507059e+37
  %v1174 = vand.u32 %v1162, 2147483648
  %v1175 = vor.u32 1.1754944e-38, %v1174
  %v1176 = vsel %vm1173, %v1175, %v1171
  %v1177 = vmul.f32 1.0, %v1176
  %v1178 = vtanh.pop %v1158
  %v1179 = vmul.f32 %v1177, %v1127
  %1181 = vrot.lane.b32.xlu0 %v1178, 116
  %v1182 = vpop.permute.xlu0 %1181
  %v1184 = vmul.f32 %v1177, %v1182
  %1186 = vrot.lane.b32.xlu0 %v1184, 4
  %v1187 = vpop.permute.xlu0 %1186
  %v1189 = vadd.f32 %v1179, %v1187
  %v1190 = vtanh.pop %v1189
  %1192 = vrot.lane.b32.xlu0 %v1190, 4
  %v1193 = vpop.permute.xlu0 %1192
  %v1195 = vmul.f32 %v1177, %v1193
  %1197 = vset.pattern.permute.xlu0 8
  %1198 = vperm.xlu0 %1197, %v1195
  %v1199 = vpop.permute.xlu0 %1198
  %v1201 = vmul.f32 %v1199, %v1023
  %v1202 = vadd.f32 %v1020, %v1201
  %1203 = vset.pattern.permute.xlu0 9
  %1204 = vperm.xlu0 %1203, %v1195
  %v1205 = vpop.permute.xlu0 %1204
  %v1207 = vmul.f32 %v1205, %v1026
  %v1208 = vadd.f32 %v1202, %v1207
  %1209 = vset.pattern.permute.xlu0 10
  %1210 = vperm.xlu0 %1209, %v1195
  %v1211 = vpop.permute.xlu0 %1210
  %v1213 = vmul.f32 %v1211, %v1029
  %v1214 = vadd.f32 %v1208, %v1213
  %1215 = vset.pattern.permute.xlu0 11
  %1216 = vperm.xlu0 %1215, %v1195
  %v1217 = vpop.permute.xlu0 %1216
  %v1219 = vmul.f32 %v1217, %v1032
  %v1220 = vadd.f32 %v1214, %v1219
  %v1221 = vxor.u32 %v1220, 2147483648
  %v1222 = vmul.f32 %v1221, 1.442695
  %v1223 = vpow.pop %v1222
  %v1224 = vadd.f32 %v1223, 1.0
  %v1225 = vrcp.pop %v1224
  %v1226 = vmul.f32 %v1224, %v1225
  %v1227 = vsub.f32 1.0, %v1226
  %v1228 = vmul.f32 %v1225, %v1227
  %v1229 = vadd.f32 %v1225, %v1228
  %vm1230 = vweird.f32 %v1224
  %vm1231 = vweird.f32 %v1225
  %vm1232 = vmor %vm1230, %vm1231
  %v1233 = vsel %vm1232, %v1225, %v1229
  %v1234 = vand.u32 2147483647, %v1224
  %vm1235 = vcmp.eq.f32.partialorder %v1234, 8.507059e+37
  %v1236 = vand.u32 %v1224, 2147483648
  %v1237 = vor.u32 1.1754944e-38, %v1236
  %v1238 = vsel %vm1235, %v1237, %v1233
  %v1239 = vmul.f32 1.0, %v1238
  %v1240 = vtanh.pop %v1220
  %v1241 = vmul.f32 %v1239, %v1189
  %1243 = vrot.lane.b32.xlu0 %v1240, 116
  %v1244 = vpop.permute.xlu0 %1243
  %v1246 = vmul.f32 %v1239, %v1244
  %1248 = vrot.lane.b32.xlu0 %v1246, 4
  %v1249 = vpop.permute.xlu0 %1248
  %v1251 = vadd.f32 %v1241, %v1249
  %v1252 = vtanh.pop %v1251
  %1254 = vrot.lane.b32.xlu0 %v1252, 4
  %v1255 = vpop.permute.xlu0 %1254
  %v1257 = vmul.f32 %v1239, %v1255
  %1259 = vset.pattern.permute.xlu0 8
  %1260 = vperm.xlu0 %1259, %v1257
  %v1261 = vpop.permute.xlu0 %1260
  %v1263 = vmul.f32 %v1261, %v1023
  %v1264 = vadd.f32 %v1020, %v1263
  %1265 = vset.pattern.permute.xlu0 9
  %1266 = vperm.xlu0 %1265, %v1257
  %v1267 = vpop.permute.xlu0 %1266
  %v1269 = vmul.f32 %v1267, %v1026
  %v1270 = vadd.f32 %v1264, %v1269
  %1271 = vset.pattern.permute.xlu0 10
  %1272 = vperm.xlu0 %1271, %v1257
  %v1273 = vpop.permute.xlu0 %1272
  %v1275 = vmul.f32 %v1273, %v1029
  %v1276 = vadd.f32 %v1270, %v1275
  %1277 = vset.pattern.permute.xlu0 11
  %1278 = vperm.xlu0 %1277, %v1257
  %v1279 = vpop.permute.xlu0 %1278
  %v1281 = vmul.f32 %v1279, %v1032
  %v1282 = vadd.f32 %v1276, %v1281
  %v1283 = vxor.u32 %v1282, 2147483648
  %v1284 = vmul.f32 %v1283, 1.442695
  %v1285 = vpow.pop %v1284
  %v1286 = vadd.f32 %v1285, 1.0
  %v1287 = vrcp.pop %v1286
  %v1288 = vmul.f32 %v1286, %v1287
  %v1289 = vsub.f32 1.0, %v1288
  %v1290 = vmul.f32 %v1287, %v1289
  %v1291 = vadd.f32 %v1287, %v1290
  %vm1292 = vweird.f32 %v1286
  %vm1293 = vweird.f32 %v1287
  %vm1294 = vmor %vm1292, %vm1293
  %v1295 = vsel %vm1294, %v1287, %v1291
  %v1296 = vand.u32 2147483647, %v1286
  %vm1297 = vcmp.eq.f32.partialorder %v1296, 8.507059e+37
  %v1298 = vand.u32 %v1286, 2147483648
  %v1299 = vor.u32 1.1754944e-38, %v1298
  %v1300 = vsel %vm1297, %v1299, %v1295
  %v1301 = vmul.f32 1.0, %v1300
  %v1302 = vtanh.pop %v1282
  %v1303 = vmul.f32 %v1301, %v1251
  %1305 = vrot.lane.b32.xlu0 %v1302, 116
  %v1306 = vpop.permute.xlu0 %1305
  %v1308 = vmul.f32 %v1301, %v1306
  %1310 = vrot.lane.b32.xlu0 %v1308, 4
  %v1311 = vpop.permute.xlu0 %1310
  %v1313 = vadd.f32 %v1303, %v1311
  %v1314 = vtanh.pop %v1313
  %1316 = vrot.lane.b32.xlu0 %v1314, 4
  %v1317 = vpop.permute.xlu0 %1316
  %v1319 = vmul.f32 %v1301, %v1317
  %1321 = vset.pattern.permute.xlu0 8
  %1322 = vperm.xlu0 %1321, %v1319
  %v1323 = vpop.permute.xlu0 %1322
  %v1325 = vmul.f32 %v1323, %v1023
  %v1326 = vadd.f32 %v1020, %v1325
  %1327 = vset.pattern.permute.xlu0 9
  %1328 = vperm.xlu0 %1327, %v1319
  %v1329 = vpop.permute.xlu0 %1328
  %v1331 = vmul.f32 %v1329, %v1026
  %v1332 = vadd.f32 %v1326, %v1331
  %1333 = vset.pattern.permute.xlu0 10
  %1334 = vperm.xlu0 %1333, %v1319
  %v1335 = vpop.permute.xlu0 %1334
  %v1337 = vmul.f32 %v1335, %v1029
  %v1338 = vadd.f32 %v1332, %v1337
  %1339 = vset.pattern.permute.xlu0 11
  %1340 = vperm.xlu0 %1339, %v1319
  %v1341 = vpop.permute.xlu0 %1340
  %v1343 = vmul.f32 %v1341, %v1032
  %v1344 = vadd.f32 %v1338, %v1343
  %v1345 = vxor.u32 %v1344, 2147483648
  %v1346 = vmul.f32 %v1345, 1.442695
  %v1347 = vpow.pop %v1346
  %v1348 = vadd.f32 %v1347, 1.0
  %v1349 = vrcp.pop %v1348
  %v1350 = vmul.f32 %v1348, %v1349
  %v1351 = vsub.f32 1.0, %v1350
  %v1352 = vmul.f32 %v1349, %v1351
  %v1353 = vadd.f32 %v1349, %v1352
  %vm1354 = vweird.f32 %v1348
  %vm1355 = vweird.f32 %v1349
  %vm1356 = vmor %vm1354, %vm1355
  %v1357 = vsel %vm1356, %v1349, %v1353
  %v1358 = vand.u32 2147483647, %v1348
  %vm1359 = vcmp.eq.f32.partialorder %v1358, 8.507059e+37
  %v1360 = vand.u32 %v1348, 2147483648
  %v1361 = vor.u32 1.1754944e-38, %v1360
  %v1362 = vsel %vm1359, %v1361, %v1357
  %v1363 = vmul.f32 1.0, %v1362
  %v1364 = vtanh.pop %v1344
  %v1365 = vmul.f32 %v1363, %v1313
  %1367 = vrot.lane.b32.xlu0 %v1364, 116
  %v1368 = vpop.permute.xlu0 %1367
  %v1370 = vmul.f32 %v1363, %v1368
  %1372 = vrot.lane.b32.xlu0 %v1370, 4
  %v1373 = vpop.permute.xlu0 %1372
  %v1375 = vadd.f32 %v1365, %v1373
  %v1376 = vtanh.pop %v1375
  %1378 = vrot.lane.b32.xlu0 %v1376, 4
  %v1379 = vpop.permute.xlu0 %1378
  %v1381 = vmul.f32 %v1363, %v1379
  %1383 = vset.pattern.permute.xlu0 8
  %1384 = vperm.xlu0 %1383, %v1381
  %v1385 = vpop.permute.xlu0 %1384
  %v1387 = vmul.f32 %v1385, %v1023
  %v1388 = vadd.f32 %v1020, %v1387
  %1389 = vset.pattern.permute.xlu0 9
  %1390 = vperm.xlu0 %1389, %v1381
  %v1391 = vpop.permute.xlu0 %1390
  %v1393 = vmul.f32 %v1391, %v1026
  %v1394 = vadd.f32 %v1388, %v1393
  %1395 = vset.pattern.permute.xlu0 10
  %1396 = vperm.xlu0 %1395, %v1381
  %v1397 = vpop.permute.xlu0 %1396
  %v1399 = vmul.f32 %v1397, %v1029
  %v1400 = vadd.f32 %v1394, %v1399
  %1401 = vset.pattern.permute.xlu0 11
  %1402 = vperm.xlu0 %1401, %v1381
  %v1403 = vpop.permute.xlu0 %1402
  %v1405 = vmul.f32 %v1403, %v1032
  %v1406 = vadd.f32 %v1400, %v1405
  %v1407 = vxor.u32 %v1406, 2147483648
  %v1408 = vmul.f32 %v1407, 1.442695
  %v1409 = vpow.pop %v1408
  %v1410 = vadd.f32 %v1409, 1.0
  %v1411 = vrcp.pop %v1410
  %v1412 = vmul.f32 %v1410, %v1411
  %v1413 = vsub.f32 1.0, %v1412
  %v1414 = vmul.f32 %v1411, %v1413
  %v1415 = vadd.f32 %v1411, %v1414
  %vm1416 = vweird.f32 %v1410
  %vm1417 = vweird.f32 %v1411
  %vm1418 = vmor %vm1416, %vm1417
  %v1419 = vsel %vm1418, %v1411, %v1415
  %v1420 = vand.u32 2147483647, %v1410
  %vm1421 = vcmp.eq.f32.partialorder %v1420, 8.507059e+37
  %v1422 = vand.u32 %v1410, 2147483648
  %v1423 = vor.u32 1.1754944e-38, %v1422
  %v1424 = vsel %vm1421, %v1423, %v1419
  %v1425 = vmul.f32 1.0, %v1424
  %v1426 = vtanh.pop %v1406
  %v1427 = vmul.f32 %v1425, %v1375
  %1429 = vrot.lane.b32.xlu0 %v1426, 116
  %v1430 = vpop.permute.xlu0 %1429
  %v1432 = vmul.f32 %v1425, %v1430
  %1434 = vrot.lane.b32.xlu0 %v1432, 4
  %v1435 = vpop.permute.xlu0 %1434
  %v1437 = vadd.f32 %v1427, %v1435
  %v1438 = vtanh.pop %v1437
  %1440 = vrot.lane.b32.xlu0 %v1438, 4
  %v1441 = vpop.permute.xlu0 %1440
  %v1443 = vmul.f32 %v1425, %v1441
  %1445 = vset.pattern.permute.xlu0 8
  %1446 = vperm.xlu0 %1445, %v1443
  %v1447 = vpop.permute.xlu0 %1446
  %v1449 = vmul.f32 %v1447, %v1023
  %v1450 = vadd.f32 %v1020, %v1449
  %1451 = vset.pattern.permute.xlu0 9
  %1452 = vperm.xlu0 %1451, %v1443
  %v1453 = vpop.permute.xlu0 %1452
  %v1455 = vmul.f32 %v1453, %v1026
  %v1456 = vadd.f32 %v1450, %v1455
  %1457 = vset.pattern.permute.xlu0 10
  %1458 = vperm.xlu0 %1457, %v1443
  %v1459 = vpop.permute.xlu0 %1458
  %v1461 = vmul.f32 %v1459, %v1029
  %v1462 = vadd.f32 %v1456, %v1461
  %1463 = vset.pattern.permute.xlu0 11
  %1464 = vperm.xlu0 %1463, %v1443
  %v1465 = vpop.permute.xlu0 %1464
  %v1467 = vmul.f32 %v1465, %v1032
  %v1468 = vadd.f32 %v1462, %v1467
  %v1469 = vxor.u32 %v1468, 2147483648
  %v1470 = vmul.f32 %v1469, 1.442695
  %v1471 = vpow.pop %v1470
  %v1472 = vadd.f32 %v1471, 1.0
  %v1473 = vrcp.pop %v1472
  %v1474 = vmul.f32 %v1472, %v1473
  %v1475 = vsub.f32 1.0, %v1474
  %v1476 = vmul.f32 %v1473, %v1475
  %v1477 = vadd.f32 %v1473, %v1476
  %vm1478 = vweird.f32 %v1472
  %vm1479 = vweird.f32 %v1473
  %vm1480 = vmor %vm1478, %vm1479
  %v1481 = vsel %vm1480, %v1473, %v1477
  %v1482 = vand.u32 2147483647, %v1472
  %vm1483 = vcmp.eq.f32.partialorder %v1482, 8.507059e+37
  %v1484 = vand.u32 %v1472, 2147483648
  %v1485 = vor.u32 1.1754944e-38, %v1484
  %v1486 = vsel %vm1483, %v1485, %v1481
  %v1487 = vmul.f32 1.0, %v1486
  %v1488 = vtanh.pop %v1468
  %v1489 = vmul.f32 %v1487, %v1437
  %1491 = vrot.lane.b32.xlu0 %v1488, 116
  %v1492 = vpop.permute.xlu0 %1491
  %v1494 = vmul.f32 %v1487, %v1492
  %1496 = vrot.lane.b32.xlu0 %v1494, 4
  %v1497 = vpop.permute.xlu0 %1496
  %v1499 = vadd.f32 %v1489, %v1497
  %v1500 = vtanh.pop %v1499
  %1502 = vrot.lane.b32.xlu0 %v1500, 4
  %v1503 = vpop.permute.xlu0 %1502
  %v1505 = vmul.f32 %v1487, %v1503
  %1506 = vrot.lane.b32.xlu0 %v1071, 120
  %v1507 = vpop.permute.xlu0 %1506
  %1509 = vrot.lane.b32.xlu0 %v1133, 124
  %v1510 = vpop.permute.xlu0 %1509
  %1512 = vrot.lane.b32.xlu0 %v1257, 4
  %v1513 = vpop.permute.xlu0 %1512
  %1515 = vrot.lane.b32.xlu0 %v1319, 8
  %v1516 = vpop.permute.xlu0 %1515
  %1518 = vrot.lane.b32.xlu0 %v1381, 12
  %v1519 = vpop.permute.xlu0 %1518
  %1521 = vrot.lane.b32.xlu0 %v1443, 16
  %v1522 = vpop.permute.xlu0 %1521
  %1525 = vrot.lane.b32.xlu0 %v1505, 20
  %v1526 = vpop.permute.xlu0 %1525
  %v1528 = vsel %vm33, %v1507, %v1510
  %vm1529 = vcmask 64512
  %v1530 = vsel %vm1529, %v1528, %v1195
  %vm1531 = vcmask 97280
  %v1532 = vsel %vm1531, %v1530, %v1513
  %vm1533 = vcmask 130048
  %v1534 = vsel %vm1533, %v1532, %v1516
  %vm1535 = vcmask 162816
  %v1536 = vsel %vm1535, %v1534, %v1519
  %vm1537 = vcmask 195584
  %v1538 = vsel %vm1537, %v1536, %v1522
  %vm1539 = vcmask 228352
  %v1540 = vsel %vm1539, %v1538, %v1526
  %vm1541 = vcmask 254976
  %1542 = vst.msk [vmem:[%s7] sm:$0x3] %vm1541, %v1540
  // Predicated region
  $region30: #{lstm_autoencoder_forward.1} parent=0 // pred_check
    _
  $region31: #{lstm_autoencoder_forward.1} parent=0 // pred_check_branch
    %1544 = sbr.rel (0) target = $region33
  $region32: #{lstm_autoencoder_forward.1} parent=0 // pred_region
    _
  $region33: #{lstm_autoencoder_forward.1} parent=0 // pred_fallthru
    _
  // Predicated region
  $region34: #{lstm_autoencoder_forward.1} parent=0 // pred_check
    _
  $region35: #{lstm_autoencoder_forward.1} parent=0 // pred_check_branch
    %1546 = sbr.rel (0) target = $region37
  $region36: #{lstm_autoencoder_forward.1} parent=0 // pred_region
    _
  $region37: #{lstm_autoencoder_forward.1} parent=0 // pred_fallthru
    _

</llo_original>
